<compile_context>
chip_gen: v5e
topology: v5e:2x2
jax: 0.10.0
libtpu: 0.0.40
codegen_flags: <defaults>
</compile_context>

<pallas_src>
import functools

import jax
import jax.numpy as jnp
from jax.experimental import pallas as pl
from jax.experimental.pallas import tpu as pltpu


def transformer_block_kernel(xq_ref, xkv_ref,
                             wq_ref, wk_ref, wv_ref, bqkv_ref,
                             w1_ref, b1_ref, w2_ref, b2_ref,
                             ln_ref,
                             o_ref,
                             kT_ref, v_ref, y_ref, acc_ref,
                             *, n_heads):
    # Grid: (batch, seq tiles, FFN hidden tiles).  The last two axes are
    # "arbitrary": seq carries the per-batch K/V scratch, f is a reduction.
    i = pl.program_id(1)        # seq tile index
    f = pl.program_id(2)        # FFN hidden tile index (reduction)
    nf = pl.num_programs(2)

    tq = xq_ref.shape[1]
    E = xq_ref.shape[2]
    H = n_heads
    D = E // H
    scale = 1.0 / (float(D) ** 0.5)

    ln = ln_ref[...].astype(jnp.float32)      # (4, E): g1, be1, g2, be2

    def layernorm(y, g, b, eps=1e-5):
        mu = jnp.mean(y, axis=-1, keepdims=True)
        var = jnp.mean((y - mu) ** 2, axis=-1, keepdims=True)
        return (y - mu) * jax.lax.rsqrt(var + eps) * g + b

    # --- once per batch element: project K/V for the full sequence into
    #     persistent VMEM scratch (K pre-transposed to (E, S)). ---
    @pl.when(jnp.logical_and(i == 0, f == 0))
    def _():
        xkv = xkv_ref[0]                                   # (S, E) bf16
        b_all = bqkv_ref[...].astype(jnp.float32)          # (3, E)
        k = jnp.dot(xkv, wk_ref[...], preferred_element_type=jnp.float32) + b_all[1:2]
        v = jnp.dot(xkv, wv_ref[...], preferred_element_type=jnp.float32) + b_all[2:3]
        kT_ref[...] = k.T.astype(jnp.bfloat16)             # (E, S)
        v_ref[...] = v.astype(jnp.bfloat16)                # (S, E)

    # --- once per (batch, seq tile): attention + residual + LayerNorm.
    #     Result cached in y_ref for all FFN hidden tiles. ---
    @pl.when(f == 0)
    def _():
        xq = xq_ref[0]                                     # (tq, E) bf16
        b_all = bqkv_ref[...].astype(jnp.float32)
        q = (jnp.dot(xq, wq_ref[...], preferred_element_type=jnp.float32)
             + b_all[0:1]).astype(jnp.bfloat16)

        # Per-head scaled dot-product attention; each head's context is stored
        # straight at its lane offset in the acc_ref slab (no concatenate).
        for h in range(H):
            sl = slice(h * D, (h + 1) * D)
            s = jnp.dot(q[:, sl], kT_ref[sl, :],
                        preferred_element_type=jnp.float32) * scale   # (tq, S)
            s = s - jnp.max(s, axis=-1, keepdims=True)
            p = jnp.exp(s)
            p = p * pl.reciprocal(jnp.sum(p, axis=-1, keepdims=True), approx=True)
            acc_ref[:, sl] = jnp.dot(p.astype(jnp.bfloat16), v_ref[:, sl],
                                     preferred_element_type=jnp.float32)

        y_ref[...] = layernorm(acc_ref[...] + xq.astype(jnp.float32),
                               ln[0:1], ln[1:2])
        # Re-purpose acc_ref as the FFN output accumulator.
        acc_ref[...] = jnp.zeros_like(acc_ref)

    # --- every f tile: one hidden chunk of Linear(E->4E) + ReLU + Linear(4E->E).
    #     Column tiling of the hidden dim commutes with the elementwise ReLU,
    #     so accumulating the partial products is exact. ---
    y_bf16 = y_ref[...].astype(jnp.bfloat16)
    h1 = (jnp.dot(y_bf16, w1_ref[...], preferred_element_type=jnp.float32)
          + b1_ref[...].astype(jnp.float32))
    h1 = jnp.maximum(h1, 0.0)
    acc_ref[...] += jnp.dot(h1.astype(jnp.bfloat16), w2_ref[...],
                            preferred_element_type=jnp.float32)

    # --- finalize: second residual + LayerNorm, write output tile. ---
    @pl.when(f == nf - 1)
    def _():
        y = y_ref[...]
        h2 = acc_ref[...] + b2_ref[...].astype(jnp.float32)
        o_ref[0] = layernorm(h2 + y, ln[2:3], ln[3:4]).astype(o_ref.dtype)


def _vmem_limit_bytes():
    # ~48 MiB on v7x (64 MiB/TC), ~100 MiB on v5e/v6e (128 MiB/TC).
    try:
        cap = pltpu.get_tpu_info().vmem_capacity_bytes
    except Exception:
        cap = 64 * 1024 * 1024   # conservative fallback (v7x per-TC size)
    return int(min(max(cap - 16 * 1024 * 1024, 32 * 1024 * 1024),
                   100 * 1024 * 1024))


def transformer_block(x, params, n_heads, *, q_block=256, f_block=512,
                      out_dtype=None):
    B, S, E = x.shape
    F = params["w1"].shape[1]
    if out_dtype is None:
        out_dtype = x.dtype

    tq = S if S <= q_block else q_block
    assert S % tq == 0, "S must be divisible by the query tile size"
    tf = F if F <= f_block else f_block
    assert F % tf == 0, "F must be divisible by the FFN hidden tile size"
    grid = (B, S // tq, F // tf)

    # Cast matmul operands to bf16 once at the call boundary; biases and LN
    # params stay f32 (they feed the f32 epilogues).
    to_bf16 = lambda a: a.astype(jnp.bfloat16)
    xb = to_bf16(x)
    wq, wk, wv = to_bf16(params["wq"]), to_bf16(params["wk"]), to_bf16(params["wv"])
    w1, w2 = to_bf16(params["w1"]), to_bf16(params["w2"])

    kernel = functools.partial(transformer_block_kernel, n_heads=n_heads)

    const = lambda shape: pl.BlockSpec(shape, lambda b, i, f: (0,) * len(shape))

    return pl.pallas_call(
        kernel,
        out_shape=jax.ShapeDtypeStruct((B, S, E), out_dtype),
        grid=grid,
        in_specs=[
            pl.BlockSpec((1, tq, E), lambda b, i, f: (b, i, 0)),  # x: query tile
            pl.BlockSpec((1, S, E), lambda b, i, f: (b, 0, 0)),   # x: full seq (K/V src)
            const((E, E)),                                        # wq
            const((E, E)),                                        # wk
            const((E, E)),                                        # wv
            const((3, E)),                                        # bq/bk/bv packed
            pl.BlockSpec((E, tf), lambda b, i, f: (0, f)),        # FFN w1 tile
            pl.BlockSpec((1, tf), lambda b, i, f: (0, f)),        # FFN b1 tile
            pl.BlockSpec((tf, E), lambda b, i, f: (f, 0)),        # FFN w2 tile
            const((1, E)),                                        # FFN b2
            const((4, E)),                                        # LN gamma/beta packed
        ],
        out_specs=pl.BlockSpec((1, tq, E), lambda b, i, f: (b, i, 0)),
        scratch_shapes=[
            pltpu.VMEM((E, S), jnp.bfloat16),    # K^T (per batch, persistent)
            pltpu.VMEM((S, E), jnp.bfloat16),    # V   (per batch, persistent)
            pltpu.VMEM((tq, E), jnp.float32),    # post-attention-LN rows (per tile)
            pltpu.VMEM((tq, E), jnp.float32),    # attention slab / FFN accumulator
        ],
        compiler_params=pltpu.CompilerParams(
            dimension_semantics=("parallel", "arbitrary", "arbitrary"),
            vmem_limit_bytes=_vmem_limit_bytes(),
        ),
    )(xb, xb, wq, wk, wv, params["bqkv"], w1, params["b1"], w2, params["b2"],
      params["ln"])


def reference_block(x, params, n_heads):
    """Pure-JAX f32 reference mirroring the PyTorch forward exactly."""
    E = x.shape[-1]
    D = E // n_heads
    ctxs = []
    for h in range(n_heads):
        sl = slice(h * D, (h + 1) * D)
        q = x @ params["wq"][:, sl] + params["bqkv"][0, sl]
        k = x @ params["wk"][:, sl] + params["bqkv"][1, sl]
        v = x @ params["wv"][:, sl] + params["bqkv"][2, sl]
        s = (q @ jnp.swapaxes(k, -1, -2)) / (D ** 0.5)
        w = jax.nn.softmax(s, axis=-1)
        ctxs.append(w @ v)
    att = jnp.concatenate(ctxs, axis=-1)

    def ln(y, g, b, eps=1e-5):
        mu = jnp.mean(y, axis=-1, keepdims=True)
        var = jnp.mean((y - mu) ** 2, axis=-1, keepdims=True)
        return (y - mu) / jnp.sqrt(var + eps) * g + b

    g1, be1, g2, be2 = (params["ln"][0], params["ln"][1],
                        params["ln"][2], params["ln"][3])
    y = ln(att + x, g1, be1)
    h1 = jnp.maximum(y @ params["w1"] + params["b1"], 0.0)
    h2 = h1 @ params["w2"] + params["b2"]
    return ln(h2 + y, g2, be2)


def init_params(key, n_heads, embedding_dim):
    E = embedding_dim
    F = 4 * E
    assert E % n_heads == 0
    ks = jax.random.split(key, 8)
    s = 0.05
    return {
        # Per-head Linear(E, D) weights stacked along output columns -> (E, E),
        # column block [h*D:(h+1)*D] == head h (matches torch.cat(dim=-1)).
        "wq": jax.random.normal(ks[0], (E, E), jnp.float32) * s,
        "wk": jax.random.normal(ks[1], (E, E), jnp.float32) * s,
        "wv": jax.random.normal(ks[2], (E, E), jnp.float32) * s,
        "bqkv": jax.random.normal(ks[3], (3, E), jnp.float32) * s,   # bq/bk/bv rows
        "w1": jax.random.normal(ks[4], (E, F), jnp.float32) * s,
        "b1": jax.random.normal(ks[5], (1, F), jnp.float32) * s,
        "w2": jax.random.normal(ks[6], (F, E), jnp.float32) * s,
        "b2": jax.random.normal(ks[7], (1, E), jnp.float32) * s,
        # LayerNorm defaults: gamma=1, beta=0 (rows: g1, be1, g2, be2).
        "ln": jnp.concatenate(
            [jnp.ones((1, E)), jnp.zeros((1, E)),
             jnp.ones((1, E)), jnp.zeros((1, E))], axis=0).astype(jnp.float32),
    }


if __name__ == "__main__":
    B, S, E, H = 2, 8, 32, 4   # batch, seq, embedding_dim, n_heads (att_dim = 8)
    key = jax.random.PRNGKey(0)
    kx, kp = jax.random.split(key)
    x = jax.random.normal(kx, (B, S, E), jnp.float32)
    params = init_params(kp, H, E)

    out = transformer_block(x, params, H, out_dtype=jnp.bfloat16)
    out = jax.block_until_ready(out)

    ref = reference_block(x, params, H)
    assert out.shape == (B, S, E)
    # Tolerance accounts for bf16 matmul operands, approx softmax reciprocal
    # and the bf16 output cast; all statistics stay f32.
    outf = out.astype(jnp.float32)
    err = jnp.max(jnp.abs(outf - ref))
    assert jnp.allclose(outf, ref, rtol=2e-2, atol=3e-2), f"max abs err {err}"
    print("KERNEL_OK")
</pallas_src>

<mosaic_0001>
module attributes {stable_mosaic.version = 11 : i64} {
  func.func @transformer_block_kernel(%arg0: i32, %arg1: i32, %arg2: i32, %arg3: memref<1x8x32xbf16, #tpu.memory_space<vmem>>, %arg4: memref<1x8x32xbf16, #tpu.memory_space<vmem>>, %arg5: memref<32x32xbf16, #tpu.memory_space<vmem>>, %arg6: memref<32x32xbf16, #tpu.memory_space<vmem>>, %arg7: memref<32x32xbf16, #tpu.memory_space<vmem>>, %arg8: memref<3x32xf32, #tpu.memory_space<vmem>>, %arg9: memref<32x128xbf16, #tpu.memory_space<vmem>>, %arg10: memref<1x128xf32, #tpu.memory_space<vmem>>, %arg11: memref<128x32xbf16, #tpu.memory_space<vmem>>, %arg12: memref<1x32xf32, #tpu.memory_space<vmem>>, %arg13: memref<4x32xf32, #tpu.memory_space<vmem>>, %arg14: memref<1x8x32xbf16, #tpu.memory_space<vmem>>, %arg15: memref<32x8xbf16, #tpu.memory_space<vmem>>, %arg16: memref<8x32xbf16, #tpu.memory_space<vmem>>, %arg17: memref<8x32xf32, #tpu.memory_space<vmem>>, %arg18: memref<8x32xf32, #tpu.memory_space<vmem>>) attributes {dimension_semantics = [#tpu.dimension_semantics<parallel>, #tpu.dimension_semantics<arbitrary>, #tpu.dimension_semantics<arbitrary>], iteration_bounds = array<i64: 2, 1, 1>, scalar_prefetch = 0 : i64, scratch_operands = 4 : i64, tpu.core_type = #tpu.core_type<tc>, window_params = [{transform_indices = @transform_0, window_bounds = array<i64: 1, 8, 32>}, {transform_indices = @transform_1, window_bounds = array<i64: 1, 8, 32>}, {pipeline_mode = #tpu.pipeline_mode<synchronous>, transform_indices = @transform_2, window_bounds = array<i64: 32, 32>}, {pipeline_mode = #tpu.pipeline_mode<synchronous>, transform_indices = @transform_3, window_bounds = array<i64: 32, 32>}, {pipeline_mode = #tpu.pipeline_mode<synchronous>, transform_indices = @transform_4, window_bounds = array<i64: 32, 32>}, {pipeline_mode = #tpu.pipeline_mode<synchronous>, transform_indices = @transform_5, window_bounds = array<i64: 3, 32>}, {transform_indices = @transform_6, window_bounds = array<i64: 32, 128>}, {transform_indices = @transform_7, window_bounds = array<i64: 1, 128>}, {transform_indices = @transform_8, window_bounds = array<i64: 128, 32>}, {pipeline_mode = #tpu.pipeline_mode<synchronous>, transform_indices = @transform_9, window_bounds = array<i64: 1, 32>}, {pipeline_mode = #tpu.pipeline_mode<synchronous>, transform_indices = @transform_10, window_bounds = array<i64: 4, 32>}, {transform_indices = @transform_11, window_bounds = array<i64: 1, 8, 32>}]} {
    %c0 = arith.constant 0 : index
    %c0_0 = arith.constant 0 : index
    %0 = vector.load %arg13[%c0, %c0_0] : memref<4x32xf32, #tpu.memory_space<vmem>>, vector<4x32xf32>
    %c0_i32 = arith.constant 0 : i32
    %1 = arith.cmpi eq, %arg1, %c0_i32 : i32
    %c0_i32_1 = arith.constant 0 : i32
    %2 = arith.cmpi eq, %arg2, %c0_i32_1 : i32
    %3 = arith.andi %1, %2 : i1
    %4 = arith.extui %3 : i1 to i32
    %c0_i32_2 = arith.constant 0 : i32
    %5 = arith.cmpi ne, %4, %c0_i32_2 : i32
    scf.if %5 {
      %c0_21 = arith.constant 0 : index
      %c0_22 = arith.constant 0 : index
      %c0_23 = arith.constant 0 : index
      %27 = vector.load %arg4[%c0_21, %c0_22, %c0_23] : memref<1x8x32xbf16, #tpu.memory_space<vmem>>, vector<1x8x32xbf16>
      %28 = vector.shape_cast %27 : vector<1x8x32xbf16> to vector<8x32xbf16>
      %c0_24 = arith.constant 0 : index
      %c0_25 = arith.constant 0 : index
      %29 = vector.load %arg8[%c0_24, %c0_25] : memref<3x32xf32, #tpu.memory_space<vmem>>, vector<3x32xf32>
      %c0_26 = arith.constant 0 : index
      %c0_27 = arith.constant 0 : index
      %30 = vector.load %arg6[%c0_26, %c0_27] : memref<32x32xbf16, #tpu.memory_space<vmem>>, vector<32x32xbf16>
      %cst_28 = arith.constant dense<0.000000e+00> : vector<8x32xf32>
      %31 = tpu.matmul %28, %30, %cst_28 {dimension_numbers = #tpu.dot_dimension_numbers<[1], [0], [0], [1], [0, 0, 1, 1], [], []>} : vector<8x32xbf16>, vector<32x32xbf16>, vector<8x32xf32> -> vector<8x32xf32>
      %32 = vector.extract_strided_slice %29 {offsets = [1, 0], sizes = [1, 32], strides = [1, 1]} : vector<3x32xf32> to vector<1x32xf32>
      %33 = vector.broadcast %32 : vector<1x32xf32> to vector<8x32xf32>
      %34 = arith.addf %31, %33 : vector<8x32xf32>
      %c0_29 = arith.constant 0 : index
      %c0_30 = arith.constant 0 : index
      %35 = vector.load %arg7[%c0_29, %c0_30] : memref<32x32xbf16, #tpu.memory_space<vmem>>, vector<32x32xbf16>
      %cst_31 = arith.constant dense<0.000000e+00> : vector<8x32xf32>
      %36 = tpu.matmul %28, %35, %cst_31 {dimension_numbers = #tpu.dot_dimension_numbers<[1], [0], [0], [1], [0, 0, 1, 1], [], []>} : vector<8x32xbf16>, vector<32x32xbf16>, vector<8x32xf32> -> vector<8x32xf32>
      %37 = vector.extract_strided_slice %29 {offsets = [2, 0], sizes = [1, 32], strides = [1, 1]} : vector<3x32xf32> to vector<1x32xf32>
      %38 = vector.broadcast %37 : vector<1x32xf32> to vector<8x32xf32>
      %39 = arith.addf %36, %38 : vector<8x32xf32>
      %40 = tpu.transpose %34, [1, 0] : vector<8x32xf32> -> vector<32x8xf32>
      %41 = arith.truncf %40 : vector<32x8xf32> to vector<32x8xbf16>
      %c0_32 = arith.constant 0 : index
      %c0_33 = arith.constant 0 : index
      %42 = vector.load %arg15[%c0_32, %c0_33] : memref<32x8xbf16, #tpu.memory_space<vmem>>, vector<32x8xbf16>
      tpu.vector_store %arg15[%c0_32, %c0_33], %41 {strides = array<i32>} : memref<32x8xbf16, #tpu.memory_space<vmem>>, vector<32x8xbf16>,
      %43 = arith.truncf %39 : vector<8x32xf32> to vector<8x32xbf16>
      %c0_34 = arith.constant 0 : index
      %c0_35 = arith.constant 0 : index
      %44 = vector.load %arg16[%c0_34, %c0_35] : memref<8x32xbf16, #tpu.memory_space<vmem>>, vector<8x32xbf16>
      tpu.vector_store %arg16[%c0_34, %c0_35], %43 {strides = array<i32>} : memref<8x32xbf16, #tpu.memory_space<vmem>>, vector<8x32xbf16>,
    } else {
    }
    %c0_i32_3 = arith.constant 0 : i32
    %6 = arith.cmpi eq, %arg2, %c0_i32_3 : i32
    %7 = arith.extui %6 : i1 to i32
    %c0_i32_4 = arith.constant 0 : i32
    %8 = arith.cmpi ne, %7, %c0_i32_4 : i32
    scf.if %8 {
      %c0_21 = arith.constant 0 : index
      %c0_22 = arith.constant 0 : index
      %c0_23 = arith.constant 0 : index
      %27 = vector.load %arg3[%c0_21, %c0_22, %c0_23] : memref<1x8x32xbf16, #tpu.memory_space<vmem>>, vector<1x8x32xbf16>
      %28 = vector.shape_cast %27 : vector<1x8x32xbf16> to vector<8x32xbf16>
      %c0_24 = arith.constant 0 : index
      %c0_25 = arith.constant 0 : index
      %29 = vector.load %arg8[%c0_24, %c0_25] : memref<3x32xf32, #tpu.memory_space<vmem>>, vector<3x32xf32>
      %c0_26 = arith.constant 0 : index
      %c0_27 = arith.constant 0 : index
      %30 = vector.load %arg5[%c0_26, %c0_27] : memref<32x32xbf16, #tpu.memory_space<vmem>>, vector<32x32xbf16>
      %cst_28 = arith.constant dense<0.000000e+00> : vector<8x32xf32>
      %31 = tpu.matmul %28, %30, %cst_28 {dimension_numbers = #tpu.dot_dimension_numbers<[1], [0], [0], [1], [0, 0, 1, 1], [], []>} : vector<8x32xbf16>, vector<32x32xbf16>, vector<8x32xf32> -> vector<8x32xf32>
      %32 = vector.extract_strided_slice %29 {offsets = [0, 0], sizes = [1, 32], strides = [1, 1]} : vector<3x32xf32> to vector<1x32xf32>
      %33 = vector.broadcast %32 : vector<1x32xf32> to vector<8x32xf32>
      %34 = arith.addf %31, %33 : vector<8x32xf32>
      %35 = arith.truncf %34 : vector<8x32xf32> to vector<8x32xbf16>
      %36 = vector.extract_strided_slice %35 {offsets = [0, 0], sizes = [8, 8], strides = [1, 1]} : vector<8x32xbf16> to vector<8x8xbf16>
      %c0_29 = arith.constant 0 : index
      %c0_30 = arith.constant 0 : index
      %37 = vector.load %arg15[%c0_29, %c0_30] : memref<32x8xbf16, #tpu.memory_space<vmem>>, vector<8x8xbf16>
      %cst_31 = arith.constant dense<0.000000e+00> : vector<8x8xf32>
      %38 = tpu.matmul %36, %37, %cst_31 {dimension_numbers = #tpu.dot_dimension_numbers<[1], [0], [0], [1], [0, 0, 1, 1], [], []>} : vector<8x8xbf16>, vector<8x8xbf16>, vector<8x8xf32> -> vector<8x8xf32>
      %cst_32 = arith.constant 0.353553385 : f32
      %39 = vector.broadcast %cst_32 : f32 to vector<8x8xf32>
      %40 = arith.mulf %38, %39 : vector<8x8xf32>
      %cst_33 = arith.constant dense<0xFF800000> : vector<8xf32>
      %41 = vector.multi_reduction <maximumf>, %40, %cst_33 [1] : vector<8x8xf32> to vector<8xf32>
      %42 = vector.shape_cast %41 : vector<8xf32> to vector<8x1xf32>
      %43 = vector.broadcast %42 : vector<8x1xf32> to vector<8x8xf32>
      %44 = arith.subf %40, %43 : vector<8x8xf32>
      %45 = math.exp %44 : vector<8x8xf32>
      %cst_34 = arith.constant dense<0.000000e+00> : vector<8xf32>
      %46 = vector.multi_reduction <add>, %45, %cst_34 [1] : vector<8x8xf32> to vector<8xf32>
      %47 = vector.shape_cast %46 : vector<8xf32> to vector<8x1xf32>
      %48 = tpu.reciprocal %47 {approx = true} : vector<8x1xf32> -> vector<8x1xf32>
      %49 = vector.broadcast %48 : vector<8x1xf32> to vector<8x8xf32>
      %50 = arith.mulf %45, %49 : vector<8x8xf32>
      %51 = arith.truncf %50 : vector<8x8xf32> to vector<8x8xbf16>
      %c0_35 = arith.constant 0 : index
      %c0_36 = arith.constant 0 : index
      %52 = vector.load %arg16[%c0_35, %c0_36] : memref<8x32xbf16, #tpu.memory_space<vmem>>, vector<8x8xbf16>
      %cst_37 = arith.constant dense<0.000000e+00> : vector<8x8xf32>
      %53 = tpu.matmul %51, %52, %cst_37 {dimension_numbers = #tpu.dot_dimension_numbers<[1], [0], [0], [1], [0, 0, 1, 1], [], []>} : vector<8x8xbf16>, vector<8x8xbf16>, vector<8x8xf32> -> vector<8x8xf32>
      %c0_38 = arith.constant 0 : index
      %c0_39 = arith.constant 0 : index
      %54 = vector.load %arg18[%c0_38, %c0_39] : memref<8x32xf32, #tpu.memory_space<vmem>>, vector<8x8xf32>
      tpu.vector_store %arg18[%c0_38, %c0_39], %53 {strides = array<i32>} : memref<8x32xf32, #tpu.memory_space<vmem>>, vector<8x8xf32>,
      %55 = vector.extract_strided_slice %35 {offsets = [0, 8], sizes = [8, 8], strides = [1, 1]} : vector<8x32xbf16> to vector<8x8xbf16>
      %c8 = arith.constant 8 : index
      %c0_40 = arith.constant 0 : index
      %56 = vector.load %arg15[%c8, %c0_40] : memref<32x8xbf16, #tpu.memory_space<vmem>>, vector<8x8xbf16>
      %cst_41 = arith.constant dense<0.000000e+00> : vector<8x8xf32>
      %57 = tpu.matmul %55, %56, %cst_41 {dimension_numbers = #tpu.dot_dimension_numbers<[1], [0], [0], [1], [0, 0, 1, 1], [], []>} : vector<8x8xbf16>, vector<8x8xbf16>, vector<8x8xf32> -> vector<8x8xf32>
      %cst_42 = arith.constant 0.353553385 : f32
      %58 = vector.broadcast %cst_42 : f32 to vector<8x8xf32>
      %59 = arith.mulf %57, %58 : vector<8x8xf32>
      %cst_43 = arith.constant dense<0xFF800000> : vector<8xf32>
      %60 = vector.multi_reduction <maximumf>, %59, %cst_43 [1] : vector<8x8xf32> to vector<8xf32>
      %61 = vector.shape_cast %60 : vector<8xf32> to vector<8x1xf32>
      %62 = vector.broadcast %61 : vector<8x1xf32> to vector<8x8xf32>
      %63 = arith.subf %59, %62 : vector<8x8xf32>
      %64 = math.exp %63 : vector<8x8xf32>
      %cst_44 = arith.constant dense<0.000000e+00> : vector<8xf32>
      %65 = vector.multi_reduction <add>, %64, %cst_44 [1] : vector<8x8xf32> to vector<8xf32>
      %66 = vector.shape_cast %65 : vector<8xf32> to vector<8x1xf32>
      %67 = tpu.reciprocal %66 {approx = true} : vector<8x1xf32> -> vector<8x1xf32>
      %68 = vector.broadcast %67 : vector<8x1xf32> to vector<8x8xf32>
      %69 = arith.mulf %64, %68 : vector<8x8xf32>
      %70 = arith.truncf %69 : vector<8x8xf32> to vector<8x8xbf16>
      %c0_45 = arith.constant 0 : index
      %c8_46 = arith.constant 8 : index
      %71 = vector.load %arg16[%c0_45, %c8_46] : memref<8x32xbf16, #tpu.memory_space<vmem>>, vector<8x8xbf16>
      %cst_47 = arith.constant dense<0.000000e+00> : vector<8x8xf32>
      %72 = tpu.matmul %70, %71, %cst_47 {dimension_numbers = #tpu.dot_dimension_numbers<[1], [0], [0], [1], [0, 0, 1, 1], [], []>} : vector<8x8xbf16>, vector<8x8xbf16>, vector<8x8xf32> -> vector<8x8xf32>
      %c0_48 = arith.constant 0 : index
      %c8_49 = arith.constant 8 : index
      %73 = vector.load %arg18[%c0_48, %c8_49] : memref<8x32xf32, #tpu.memory_space<vmem>>, vector<8x8xf32>
      tpu.vector_store %arg18[%c0_48, %c8_49], %72 {strides = array<i32>} : memref<8x32xf32, #tpu.memory_space<vmem>>, vector<8x8xf32>,
      %74 = vector.extract_strided_slice %35 {offsets = [0, 16], sizes = [8, 8], strides = [1, 1]} : vector<8x32xbf16> to vector<8x8xbf16>
      %c16 = arith.constant 16 : index
      %c0_50 = arith.constant 0 : index
      %75 = vector.load %arg15[%c16, %c0_50] : memref<32x8xbf16, #tpu.memory_space<vmem>>, vector<8x8xbf16>
      %cst_51 = arith.constant dense<0.000000e+00> : vector<8x8xf32>
      %76 = tpu.matmul %74, %75, %cst_51 {dimension_numbers = #tpu.dot_dimension_numbers<[1], [0], [0], [1], [0, 0, 1, 1], [], []>} : vector<8x8xbf16>, vector<8x8xbf16>, vector<8x8xf32> -> vector<8x8xf32>
      %cst_52 = arith.constant 0.353553385 : f32
      %77 = vector.broadcast %cst_52 : f32 to vector<8x8xf32>
      %78 = arith.mulf %76, %77 : vector<8x8xf32>
      %cst_53 = arith.constant dense<0xFF800000> : vector<8xf32>
      %79 = vector.multi_reduction <maximumf>, %78, %cst_53 [1] : vector<8x8xf32> to vector<8xf32>
      %80 = vector.shape_cast %79 : vector<8xf32> to vector<8x1xf32>
      %81 = vector.broadcast %80 : vector<8x1xf32> to vector<8x8xf32>
      %82 = arith.subf %78, %81 : vector<8x8xf32>
      %83 = math.exp %82 : vector<8x8xf32>
      %cst_54 = arith.constant dense<0.000000e+00> : vector<8xf32>
      %84 = vector.multi_reduction <add>, %83, %cst_54 [1] : vector<8x8xf32> to vector<8xf32>
      %85 = vector.shape_cast %84 : vector<8xf32> to vector<8x1xf32>
      %86 = tpu.reciprocal %85 {approx = true} : vector<8x1xf32> -> vector<8x1xf32>
      %87 = vector.broadcast %86 : vector<8x1xf32> to vector<8x8xf32>
      %88 = arith.mulf %83, %87 : vector<8x8xf32>
      %89 = arith.truncf %88 : vector<8x8xf32> to vector<8x8xbf16>
      %c0_55 = arith.constant 0 : index
      %c16_56 = arith.constant 16 : index
      %90 = vector.load %arg16[%c0_55, %c16_56] : memref<8x32xbf16, #tpu.memory_space<vmem>>, vector<8x8xbf16>
      %cst_57 = arith.constant dense<0.000000e+00> : vector<8x8xf32>
      %91 = tpu.matmul %89, %90, %cst_57 {dimension_numbers = #tpu.dot_dimension_numbers<[1], [0], [0], [1], [0, 0, 1, 1], [], []>} : vector<8x8xbf16>, vector<8x8xbf16>, vector<8x8xf32> -> vector<8x8xf32>
      %c0_58 = arith.constant 0 : index
      %c16_59 = arith.constant 16 : index
      %92 = vector.load %arg18[%c0_58, %c16_59] : memref<8x32xf32, #tpu.memory_space<vmem>>, vector<8x8xf32>
      tpu.vector_store %arg18[%c0_58, %c16_59], %91 {strides = array<i32>} : memref<8x32xf32, #tpu.memory_space<vmem>>, vector<8x8xf32>,
      %93 = vector.extract_strided_slice %35 {offsets = [0, 24], sizes = [8, 8], strides = [1, 1]} : vector<8x32xbf16> to vector<8x8xbf16>
      %c24 = arith.constant 24 : index
      %c0_60 = arith.constant 0 : index
      %94 = vector.load %arg15[%c24, %c0_60] : memref<32x8xbf16, #tpu.memory_space<vmem>>, vector<8x8xbf16>
      %cst_61 = arith.constant dense<0.000000e+00> : vector<8x8xf32>
      %95 = tpu.matmul %93, %94, %cst_61 {dimension_numbers = #tpu.dot_dimension_numbers<[1], [0], [0], [1], [0, 0, 1, 1], [], []>} : vector<8x8xbf16>, vector<8x8xbf16>, vector<8x8xf32> -> vector<8x8xf32>
      %cst_62 = arith.constant 0.353553385 : f32
      %96 = vector.broadcast %cst_62 : f32 to vector<8x8xf32>
      %97 = arith.mulf %95, %96 : vector<8x8xf32>
      %cst_63 = arith.constant dense<0xFF800000> : vector<8xf32>
      %98 = vector.multi_reduction <maximumf>, %97, %cst_63 [1] : vector<8x8xf32> to vector<8xf32>
      %99 = vector.shape_cast %98 : vector<8xf32> to vector<8x1xf32>
      %100 = vector.broadcast %99 : vector<8x1xf32> to vector<8x8xf32>
      %101 = arith.subf %97, %100 : vector<8x8xf32>
      %102 = math.exp %101 : vector<8x8xf32>
      %cst_64 = arith.constant dense<0.000000e+00> : vector<8xf32>
      %103 = vector.multi_reduction <add>, %102, %cst_64 [1] : vector<8x8xf32> to vector<8xf32>
      %104 = vector.shape_cast %103 : vector<8xf32> to vector<8x1xf32>
      %105 = tpu.reciprocal %104 {approx = true} : vector<8x1xf32> -> vector<8x1xf32>
      %106 = vector.broadcast %105 : vector<8x1xf32> to vector<8x8xf32>
      %107 = arith.mulf %102, %106 : vector<8x8xf32>
      %108 = arith.truncf %107 : vector<8x8xf32> to vector<8x8xbf16>
      %c0_65 = arith.constant 0 : index
      %c24_66 = arith.constant 24 : index
      %109 = vector.load %arg16[%c0_65, %c24_66] : memref<8x32xbf16, #tpu.memory_space<vmem>>, vector<8x8xbf16>
      %cst_67 = arith.constant dense<0.000000e+00> : vector<8x8xf32>
      %110 = tpu.matmul %108, %109, %cst_67 {dimension_numbers = #tpu.dot_dimension_numbers<[1], [0], [0], [1], [0, 0, 1, 1], [], []>} : vector<8x8xbf16>, vector<8x8xbf16>, vector<8x8xf32> -> vector<8x8xf32>
      %c0_68 = arith.constant 0 : index
      %c24_69 = arith.constant 24 : index
      %111 = vector.load %arg18[%c0_68, %c24_69] : memref<8x32xf32, #tpu.memory_space<vmem>>, vector<8x8xf32>
      tpu.vector_store %arg18[%c0_68, %c24_69], %110 {strides = array<i32>} : memref<8x32xf32, #tpu.memory_space<vmem>>, vector<8x8xf32>,
      %c0_70 = arith.constant 0 : index
      %c0_71 = arith.constant 0 : index
      %112 = vector.load %arg18[%c0_70, %c0_71] : memref<8x32xf32, #tpu.memory_space<vmem>>, vector<8x32xf32>
      %113 = arith.extf %28 : vector<8x32xbf16> to vector<8x32xf32>
      %114 = arith.addf %112, %113 : vector<8x32xf32>
      %115 = vector.extract_strided_slice %0 {offsets = [0, 0], sizes = [1, 32], strides = [1, 1]} : vector<4x32xf32> to vector<1x32xf32>
      %116 = vector.extract_strided_slice %0 {offsets = [1, 0], sizes = [1, 32], strides = [1, 1]} : vector<4x32xf32> to vector<1x32xf32>
      %cst_72 = arith.constant dense<0.000000e+00> : vector<8xf32>
      %117 = vector.multi_reduction <add>, %114, %cst_72 [1] : vector<8x32xf32> to vector<8xf32>
      %118 = vector.shape_cast %117 : vector<8xf32> to vector<8x1xf32>
      %cst_73 = arith.constant 3.200000e+01 : f32
      %119 = vector.broadcast %cst_73 : f32 to vector<8x1xf32>
      %120 = arith.divf %118, %119 : vector<8x1xf32>
      %121 = vector.broadcast %120 : vector<8x1xf32> to vector<8x32xf32>
      %122 = arith.subf %114, %121 : vector<8x32xf32>
      %123 = arith.mulf %122, %122 : vector<8x32xf32>
      %cst_74 = arith.constant dense<0.000000e+00> : vector<8xf32>
      %124 = vector.multi_reduction <add>, %123, %cst_74 [1] : vector<8x32xf32> to vector<8xf32>
      %125 = vector.shape_cast %124 : vector<8xf32> to vector<8x1xf32>
      %cst_75 = arith.constant 3.200000e+01 : f32
      %126 = vector.broadcast %cst_75 : f32 to vector<8x1xf32>
      %127 = arith.divf %125, %126 : vector<8x1xf32>
      %128 = vector.broadcast %120 : vector<8x1xf32> to vector<8x32xf32>
      %129 = arith.subf %114, %128 : vector<8x32xf32>
      %cst_76 = arith.constant 9.99999974E-6 : f32
      %130 = vector.broadcast %cst_76 : f32 to vector<8x1xf32>
      %131 = arith.addf %127, %130 : vector<8x1xf32>
      %132 = math.rsqrt %131 : vector<8x1xf32>
      %133 = vector.broadcast %132 : vector<8x1xf32> to vector<8x32xf32>
      %134 = arith.mulf %129, %133 : vector<8x32xf32>
      %135 = vector.broadcast %115 : vector<1x32xf32> to vector<8x32xf32>
      %136 = arith.mulf %134, %135 : vector<8x32xf32>
      %137 = vector.broadcast %116 : vector<1x32xf32> to vector<8x32xf32>
      %138 = arith.addf %136, %137 : vector<8x32xf32>
      %c0_77 = arith.constant 0 : index
      %c0_78 = arith.constant 0 : index
      %139 = vector.load %arg17[%c0_77, %c0_78] : memref<8x32xf32, #tpu.memory_space<vmem>>, vector<8x32xf32>
      tpu.vector_store %arg17[%c0_77, %c0_78], %138 {strides = array<i32>} : memref<8x32xf32, #tpu.memory_space<vmem>>, vector<8x32xf32>,
      %cst_79 = arith.constant 0.000000e+00 : f32
      %140 = vector.broadcast %cst_79 : f32 to vector<8x32xf32>
      %c0_80 = arith.constant 0 : index
      %c0_81 = arith.constant 0 : index
      %141 = vector.load %arg18[%c0_80, %c0_81] : memref<8x32xf32, #tpu.memory_space<vmem>>, vector<8x32xf32>
      tpu.vector_store %arg18[%c0_80, %c0_81], %140 {strides = array<i32>} : memref<8x32xf32, #tpu.memory_space<vmem>>, vector<8x32xf32>,
    } else {
    }
    %c0_5 = arith.constant 0 : index
    %c0_6 = arith.constant 0 : index
    %9 = vector.load %arg17[%c0_5, %c0_6] : memref<8x32xf32, #tpu.memory_space<vmem>>, vector<8x32xf32>
    %10 = arith.truncf %9 : vector<8x32xf32> to vector<8x32xbf16>
    %c0_7 = arith.constant 0 : index
    %c0_8 = arith.constant 0 : index
    %11 = vector.load %arg9[%c0_7, %c0_8] : memref<32x128xbf16, #tpu.memory_space<vmem>>, vector<32x128xbf16>
    %cst = arith.constant dense<0.000000e+00> : vector<8x128xf32>
    %12 = tpu.matmul %10, %11, %cst {dimension_numbers = #tpu.dot_dimension_numbers<[1], [0], [0], [1], [0, 0, 1, 1], [], []>} : vector<8x32xbf16>, vector<32x128xbf16>, vector<8x128xf32> -> vector<8x128xf32>
    %c0_9 = arith.constant 0 : index
    %c0_10 = arith.constant 0 : index
    %13 = vector.load %arg10[%c0_9, %c0_10] : memref<1x128xf32, #tpu.memory_space<vmem>>, vector<1x128xf32>
    %14 = vector.broadcast %13 : vector<1x128xf32> to vector<8x128xf32>
    %15 = arith.addf %12, %14 : vector<8x128xf32>
    %cst_11 = arith.constant 0.000000e+00 : f32
    %16 = vector.broadcast %cst_11 : f32 to vector<8x128xf32>
    %17 = arith.maximumf %15, %16 : vector<8x128xf32>
    %c0_12 = arith.constant 0 : index
    %c0_13 = arith.constant 0 : index
    %18 = vector.load %arg18[%c0_12, %c0_13] : memref<8x32xf32, #tpu.memory_space<vmem>>, vector<8x32xf32>
    %19 = arith.truncf %17 : vector<8x128xf32> to vector<8x128xbf16>
    %c0_14 = arith.constant 0 : index
    %c0_15 = arith.constant 0 : index
    %20 = vector.load %arg11[%c0_14, %c0_15] : memref<128x32xbf16, #tpu.memory_space<vmem>>, vector<128x32xbf16>
    %cst_16 = arith.constant dense<0.000000e+00> : vector<8x32xf32>
    %21 = tpu.matmul %19, %20, %cst_16 {dimension_numbers = #tpu.dot_dimension_numbers<[1], [0], [0], [1], [0, 0, 1, 1], [], []>} : vector<8x128xbf16>, vector<128x32xbf16>, vector<8x32xf32> -> vector<8x32xf32>
    %22 = arith.addf %18, %21 : vector<8x32xf32>
    %c0_17 = arith.constant 0 : index
    %c0_18 = arith.constant 0 : index
    %23 = vector.load %arg18[%c0_17, %c0_18] : memref<8x32xf32, #tpu.memory_space<vmem>>, vector<8x32xf32>
    tpu.vector_store %arg18[%c0_17, %c0_18], %22 {strides = array<i32>} : memref<8x32xf32, #tpu.memory_space<vmem>>, vector<8x32xf32>,
    %c0_i32_19 = arith.constant 0 : i32
    %24 = arith.cmpi eq, %arg2, %c0_i32_19 : i32
    %25 = arith.extui %24 : i1 to i32
    %c0_i32_20 = arith.constant 0 : i32
    %26 = arith.cmpi ne, %25, %c0_i32_20 : i32
    scf.if %26 {
      %c0_21 = arith.constant 0 : index
      %c0_22 = arith.constant 0 : index
      %27 = vector.load %arg17[%c0_21, %c0_22] : memref<8x32xf32, #tpu.memory_space<vmem>>, vector<8x32xf32>
      %c0_23 = arith.constant 0 : index
      %c0_24 = arith.constant 0 : index
      %28 = vector.load %arg18[%c0_23, %c0_24] : memref<8x32xf32, #tpu.memory_space<vmem>>, vector<8x32xf32>
      %c0_25 = arith.constant 0 : index
      %c0_26 = arith.constant 0 : index
      %29 = vector.load %arg12[%c0_25, %c0_26] : memref<1x32xf32, #tpu.memory_space<vmem>>, vector<1x32xf32>
      %30 = vector.broadcast %29 : vector<1x32xf32> to vector<8x32xf32>
      %31 = arith.addf %28, %30 : vector<8x32xf32>
      %32 = arith.addf %31, %27 : vector<8x32xf32>
      %33 = vector.extract_strided_slice %0 {offsets = [2, 0], sizes = [1, 32], strides = [1, 1]} : vector<4x32xf32> to vector<1x32xf32>
      %34 = vector.extract_strided_slice %0 {offsets = [3, 0], sizes = [1, 32], strides = [1, 1]} : vector<4x32xf32> to vector<1x32xf32>
      %cst_27 = arith.constant dense<0.000000e+00> : vector<8xf32>
      %35 = vector.multi_reduction <add>, %32, %cst_27 [1] : vector<8x32xf32> to vector<8xf32>
      %36 = vector.shape_cast %35 : vector<8xf32> to vector<8x1xf32>
      %cst_28 = arith.constant 3.200000e+01 : f32
      %37 = vector.broadcast %cst_28 : f32 to vector<8x1xf32>
      %38 = arith.divf %36, %37 : vector<8x1xf32>
      %39 = vector.broadcast %38 : vector<8x1xf32> to vector<8x32xf32>
      %40 = arith.subf %32, %39 : vector<8x32xf32>
      %41 = arith.mulf %40, %40 : vector<8x32xf32>
      %cst_29 = arith.constant dense<0.000000e+00> : vector<8xf32>
      %42 = vector.multi_reduction <add>, %41, %cst_29 [1] : vector<8x32xf32> to vector<8xf32>
      %43 = vector.shape_cast %42 : vector<8xf32> to vector<8x1xf32>
      %cst_30 = arith.constant 3.200000e+01 : f32
      %44 = vector.broadcast %cst_30 : f32 to vector<8x1xf32>
      %45 = arith.divf %43, %44 : vector<8x1xf32>
      %46 = vector.broadcast %38 : vector<8x1xf32> to vector<8x32xf32>
      %47 = arith.subf %32, %46 : vector<8x32xf32>
      %cst_31 = arith.constant 9.99999974E-6 : f32
      %48 = vector.broadcast %cst_31 : f32 to vector<8x1xf32>
      %49 = arith.addf %45, %48 : vector<8x1xf32>
      %50 = math.rsqrt %49 : vector<8x1xf32>
      %51 = vector.broadcast %50 : vector<8x1xf32> to vector<8x32xf32>
      %52 = arith.mulf %47, %51 : vector<8x32xf32>
      %53 = vector.broadcast %33 : vector<1x32xf32> to vector<8x32xf32>
      %54 = arith.mulf %52, %53 : vector<8x32xf32>
      %55 = vector.broadcast %34 : vector<1x32xf32> to vector<8x32xf32>
      %56 = arith.addf %54, %55 : vector<8x32xf32>
      %57 = arith.truncf %56 : vector<8x32xf32> to vector<8x32xbf16>
      %c0_32 = arith.constant 0 : index
      %c0_33 = arith.constant 0 : index
      %c0_34 = arith.constant 0 : index
      %58 = vector.load %arg14[%c0_32, %c0_33, %c0_34] : memref<1x8x32xbf16, #tpu.memory_space<vmem>>, vector<1x8x32xbf16>
      %59 = vector.shape_cast %58 : vector<1x8x32xbf16> to vector<8x32xbf16>
      %60 = vector.shape_cast %57 : vector<8x32xbf16> to vector<1x8x32xbf16>
      tpu.vector_store %arg14[%c0_32, %c0_33, %c0_34], %60 {strides = array<i32>} : memref<1x8x32xbf16, #tpu.memory_space<vmem>>, vector<1x8x32xbf16>,
    } else {
    }
    return
  }
  func.func @transform_0(%arg0: i32, %arg1: i32, %arg2: i32) -> (i32, i32, i32) {
    %c0_i32 = arith.constant 0 : i32
    %c0_i32_0 = arith.constant 0 : i32
    return %arg0, %arg1, %c0_i32 : i32, i32, i32
  }
  func.func @transform_1(%arg0: i32, %arg1: i32, %arg2: i32) -> (i32, i32, i32) {
    %c0_i32 = arith.constant 0 : i32
    %c0_i32_0 = arith.constant 0 : i32
    %c0_i32_1 = arith.constant 0 : i32
    return %arg0, %c0_i32, %c0_i32_0 : i32, i32, i32
  }
  func.func @transform_2(%arg0: i32, %arg1: i32, %arg2: i32) -> (i32, i32) {
    %c0_i32 = arith.constant 0 : i32
    %c0_i32_0 = arith.constant 0 : i32
    %c0_i32_1 = arith.constant 0 : i32
    return %c0_i32, %c0_i32_0 : i32, i32
  }
  func.func @transform_3(%arg0: i32, %arg1: i32, %arg2: i32) -> (i32, i32) {
    %c0_i32 = arith.constant 0 : i32
    %c0_i32_0 = arith.constant 0 : i32
    %c0_i32_1 = arith.constant 0 : i32
    return %c0_i32, %c0_i32_0 : i32, i32
  }
  func.func @transform_4(%arg0: i32, %arg1: i32, %arg2: i32) -> (i32, i32) {
    %c0_i32 = arith.constant 0 : i32
    %c0_i32_0 = arith.constant 0 : i32
    %c0_i32_1 = arith.constant 0 : i32
    return %c0_i32, %c0_i32_0 : i32, i32
  }
  func.func @transform_5(%arg0: i32, %arg1: i32, %arg2: i32) -> (i32, i32) {
    %c0_i32 = arith.constant 0 : i32
    %c0_i32_0 = arith.constant 0 : i32
    %c0_i32_1 = arith.constant 0 : i32
    return %c0_i32, %c0_i32_0 : i32, i32
  }
  func.func @transform_6(%arg0: i32, %arg1: i32, %arg2: i32) -> (i32, i32) {
    %c0_i32 = arith.constant 0 : i32
    %c0_i32_0 = arith.constant 0 : i32
    return %c0_i32, %arg2 : i32, i32
  }
  func.func @transform_7(%arg0: i32, %arg1: i32, %arg2: i32) -> (i32, i32) {
    %c0_i32 = arith.constant 0 : i32
    %c0_i32_0 = arith.constant 0 : i32
    return %c0_i32, %arg2 : i32, i32
  }
  func.func @transform_8(%arg0: i32, %arg1: i32, %arg2: i32) -> (i32, i32) {
    %c0_i32 = arith.constant 0 : i32
    %c0_i32_0 = arith.constant 0 : i32
    return %arg2, %c0_i32 : i32, i32
  }
  func.func @transform_9(%arg0: i32, %arg1: i32, %arg2: i32) -> (i32, i32) {
    %c0_i32 = arith.constant 0 : i32
    %c0_i32_0 = arith.constant 0 : i32
    %c0_i32_1 = arith.constant 0 : i32
    return %c0_i32, %c0_i32_0 : i32, i32
  }
  func.func @transform_10(%arg0: i32, %arg1: i32, %arg2: i32) -> (i32, i32) {
    %c0_i32 = arith.constant 0 : i32
    %c0_i32_0 = arith.constant 0 : i32
    %c0_i32_1 = arith.constant 0 : i32
    return %c0_i32, %c0_i32_0 : i32, i32
  }
  func.func @transform_11(%arg0: i32, %arg1: i32, %arg2: i32) -> (i32, i32, i32) {
    %c0_i32 = arith.constant 0 : i32
    %c0_i32_0 = arith.constant 0 : i32
    return %arg0, %arg1, %c0_i32 : i32, i32, i32
  }
}

</mosaic_0001>

<llo_original>
// kernel: tpu_custom_call.1
$region0: #{tpu_custom_call.1}
  #allocation0 [shape = 'u32[]', space=smem, size = 0x4, offset = 0x4, fixed_abs, tag = 'smem constant byte address 0x4 - core index']
  #allocation1 [shape = 'u32[72,128]{1,0:T(1,128)}', space=vmem, size = 0x9000, scoped, tag = 'internal scratch']
  #allocation2 [shape = 'bf16[32,8]{1,0:T(8,128)(2,1)}', space=vmem, size = 0x2000, scoped, tag = 'scratch operand']
  #allocation3 [shape = 'bf16[8,32]{1,0:T(8,128)(2,1)}', space=vmem, size = 0x800, scoped, tag = 'scratch operand']
  #allocation4 [shape = 'f32[8,32]{1,0:T(8,128)}', space=vmem, size = 0x1000, scoped, tag = 'scratch operand']
  #allocation5 [shape = 'f32[8,32]{1,0:T(8,128)}', space=vmem, size = 0x1000, scoped, tag = 'scratch operand']
  %s0 = inlined_call_operand.vmem [shape: bf16[2,8,32], index: 0, kind: input, shape index: {}]
  %s1 = inlined_call_operand.vmem [shape: bf16[2,8,32], index: 1, kind: input, shape index: {}]
  %s2 = inlined_call_operand.vmem [shape: bf16[32,32], index: 2, kind: input, shape index: {}]
  %s3 = inlined_call_operand.vmem [shape: bf16[32,32], index: 3, kind: input, shape index: {}]
  %s4 = inlined_call_operand.vmem [shape: bf16[32,32], index: 4, kind: input, shape index: {}]
  %s5 = inlined_call_operand.vmem [shape: f32[3,32], index: 5, kind: input, shape index: {}]
  %s6 = inlined_call_operand.vmem [shape: bf16[32,128], index: 6, kind: input, shape index: {}]
  %s7 = inlined_call_operand.hbm [shape: f32[1,128], index: 7, kind: input, shape index: {}]
  %s8 = inlined_call_operand.vmem [shape: bf16[128,32], index: 8, kind: input, shape index: {}]
  %s9 = inlined_call_operand.hbm [shape: f32[1,32], index: 9, kind: input, shape index: {}]
  %s10 = inlined_call_operand.vmem [shape: f32[4,32], index: 10, kind: input, shape index: {}]
  %s11 = inlined_call_operand.hbm [shape: bf16[2,8,32], index: 11, kind: output, shape index: {}]
  %s12 = sld [smem:[#allocation0]]
  $region97: #{tpu_custom_call.1} parent=0
    _
  %s14 = ssub.s32 1, %s12
  %s15 = scalar_select 0, %s14, %s12
  $region1: #{tpu_custom_call.1} parent=0
    #allocation6 [shape = 'u8[512]{0}', space=vmem, size = 0x400, scoped, tag = 'input window, operand 7, single buffered']
    #allocation7 [shape = 's32[2]{0}', space=sflag, size = 0x8, scoped, tag = 'scoped memory for tpu_custom_call.1']
    #allocation8 [shape = 's32[2]{0}', space=sflag, size = 0x8, scoped, tag = 'scoped memory for tpu_custom_call.1']
    #allocation9 [shape = 'u8[512]{0}', space=vmem, size = 0x400, scoped, tag = 'input window, operand 9, single buffered']
    #allocation10 [shape = 's32[1]{0}', space=sflag, size = 0x4, scoped, tag = 'scoped memory for tpu_custom_call.1']
    #allocation11 [shape = 'u8[4096]{0}', space=vmem, size = 0x1000, scoped, tag = 'output window, operand 0']
    %16 = vsyncpa [#allocation7], 0
    %17 = vsyncpa [#allocation10], 0
    %18 = vsyncpa [#allocation8], 0
    %s19 = scalar_lea.sflag [#allocation8], 1
    %20 = vsyncpa %s19, 0
    loop: start=0, step=1, limit=4
    $region2: #{tpu_custom_call.1} parent=1 // loop_pre_header
      _
    $region3: #{tpu_custom_call.1} parent=1 // loop_header
      %s22 = sphi 0, %s26
      %p23 = scmp.ge.s32.totalorder %s22, 4
      %s29 = sphi 0, %s48
      %s30 = sphi 0, %s44
      %s31 = sphi 0, %s40
      %s32 = sphi 0, %s29
      %s33 = sphi 0, %s30
      %s34 = sphi 0, %s31
      %s35 = sphi 0, %s32
      %s36 = sphi 0, %s33
      %s37 = sphi 0, %s34
      %s53 = sphi 0, %s55
      %s56 = sphi 0, %s53
      %s57 = sphi 0, %s56
      %s73 = sphi 0, %s57
      %s79 = sphi 0, %s81
      %s82 = sphi 0, %s79
      %s83 = sphi 0, %s82
      %s99 = sphi 0, %s83
      %s103 = sphi 0, %s103
      %s105 = sphi 0, %s103
      %s106 = sphi 0, %s105
      %s120 = sphi 0, %s106
      %s124 = sphi 0, %s124
      %s126 = sphi 0, %s124
      %s127 = sphi 0, %s126
      %s141 = sphi 0, %s127
      %s145 = sphi 0, %s145
      %s147 = sphi 0, %s145
      %s148 = sphi 0, %s147
      %s162 = sphi 0, %s148
      %s166 = sphi 0, %s166
      %s168 = sphi 0, %s166
      %s169 = sphi 0, %s168
      %s183 = sphi 0, %s169
      %s189 = sphi 0, %s191
      %s192 = sphi 0, %s189
      %s193 = sphi 0, %s192
      %s209 = sphi 0, %s193
      %s215 = sphi 0, %s217
      %s218 = sphi 0, %s215
      %s219 = sphi 0, %s218
      %s235 = sphi 0, %s219
      %s241 = sphi 0, %s243
      %s244 = sphi 0, %s241
      %s245 = sphi 0, %s244
      %s261 = sphi 0, %s245
      %s265 = sphi 0, %s265
      %s267 = sphi 0, %s265
      %s268 = sphi 0, %s267
      %s282 = sphi 0, %s268
      %s286 = sphi 0, %s286
      %s288 = sphi 0, %s286
      %s289 = sphi 0, %s288
      %s303 = sphi 0, %s289
      %s311 = sphi 0, %s313
      %s314 = sphi 0, %s311
      %s315 = sphi 0, %s314
      %s331 = sphi 0, %s315
    $region4: #{tpu_custom_call.1} parent=1 // loop_header_branch
      %25 = sbr.rel (%p23) target = $region8
    $region5: #{tpu_custom_call.1} parent=1 // loop_body
      %s27 = ssub.s32 %s22, 1
      %s28 = ssub.s32 %s22, 2
      %s38 = sadd.s32 1, %s31
      %p39 = scmp.ge.s32.totalorder %s38, 1
      %s40 = scalar_select %p39, 0, %s38
      %s41 = sadd.s32 1, %s30
      %s42 = scalar_select %p39, %s41, %s30
      %p43 = scmp.ge.s32.totalorder %s42, 1
      %s44 = scalar_select %p43, 0, %s42
      %s45 = sadd.s32 1, %s29
      %s46 = scalar_select %p43, %s45, %s29
      %p47 = scmp.ge.s32.totalorder %s46, 2
      %s48 = scalar_select %p47, 0, %s46
      %s49 = ssub.s32 %s29, %s48
      %s50 = ssub.s32 %s30, %s44
      %s51 = sor.u32 %s49, %s50
      %p52 = scmp.eq.s32.totalorder %s51, 0
      %s54 = sadd.s32 %s53, 1
      %s55 = scalar_select %p52, %s53, %s54
      %p58 = pneg %p52
      %p59 = scmp.eq.s32.totalorder %s22, 1
      %p60 = por %p58, %p59
      %p61 = scmp.ne.s32.totalorder %s53, %s56
      %p62 = scmp.eq.s32.totalorder %s22, 0
      %p63 = por %p61, %p62
      %p64 = scmp.ne.s32.totalorder %s53, %s56
      %p65 = scmp.eq.s32.totalorder %s27, 1
      %p66 = por %p64, %p65
      %p67 = scmp.ne.s32.totalorder %s56, %s57
      %p68 = scmp.eq.s32.totalorder %s27, 0
      %p69 = por %p67, %p68
      %p70 = scmp.ne.s32.totalorder %s56, %s57
      %p71 = scmp.eq.s32.totalorder %s28, 1
      %p72 = por %p70, %p71
      %p74 = scmp.ne.s32.totalorder %s57, %s73
      %p75 = scmp.eq.s32.totalorder %s28, 0
      %p76 = por %p74, %p75
      %s77 = ssub.s32 %s29, %s48
      %p78 = scmp.eq.s32.totalorder %s77, 0
      %s80 = sadd.s32 %s79, 1
      %s81 = scalar_select %p78, %s79, %s80
      %p84 = pneg %p78
      %p85 = scmp.eq.s32.totalorder %s22, 1
      %p86 = por %p84, %p85
      %p87 = scmp.ne.s32.totalorder %s79, %s82
      %p88 = scmp.eq.s32.totalorder %s22, 0
      %p89 = por %p87, %p88
      %p90 = scmp.ne.s32.totalorder %s79, %s82
      %p91 = scmp.eq.s32.totalorder %s27, 1
      %p92 = por %p90, %p91
      %p93 = scmp.ne.s32.totalorder %s82, %s83
      %p94 = scmp.eq.s32.totalorder %s27, 0
      %p95 = por %p93, %p94
      %p96 = scmp.ne.s32.totalorder %s82, %s83
      %p97 = scmp.eq.s32.totalorder %s28, 1
      %p98 = por %p96, %p97
      %p100 = scmp.ne.s32.totalorder %s83, %s99
      %p101 = scmp.eq.s32.totalorder %s28, 0
      %p102 = por %p100, %p101
      %s104 = sadd.s32 %s103, 1
      %p107 = scmp.eq.s32.totalorder %s22, 1
      %p108 = scmp.ne.s32.totalorder %s103, %s105
      %p109 = scmp.eq.s32.totalorder %s22, 0
      %p110 = por %p108, %p109
      %p111 = scmp.ne.s32.totalorder %s103, %s105
      %p112 = scmp.eq.s32.totalorder %s27, 1
      %p113 = por %p111, %p112
      %p114 = scmp.ne.s32.totalorder %s105, %s106
      %p115 = scmp.eq.s32.totalorder %s27, 0
      %p116 = por %p114, %p115
      %p117 = scmp.ne.s32.totalorder %s105, %s106
      %p118 = scmp.eq.s32.totalorder %s28, 1
      %p119 = por %p117, %p118
      %p121 = scmp.ne.s32.totalorder %s106, %s120
      %p122 = scmp.eq.s32.totalorder %s28, 0
      %p123 = por %p121, %p122
      %s125 = sadd.s32 %s124, 1
      %p128 = scmp.eq.s32.totalorder %s22, 1
      %p129 = scmp.ne.s32.totalorder %s124, %s126
      %p130 = scmp.eq.s32.totalorder %s22, 0
      %p131 = por %p129, %p130
      %p132 = scmp.ne.s32.totalorder %s124, %s126
      %p133 = scmp.eq.s32.totalorder %s27, 1
      %p134 = por %p132, %p133
      %p135 = scmp.ne.s32.totalorder %s126, %s127
      %p136 = scmp.eq.s32.totalorder %s27, 0
      %p137 = por %p135, %p136
      %p138 = scmp.ne.s32.totalorder %s126, %s127
      %p139 = scmp.eq.s32.totalorder %s28, 1
      %p140 = por %p138, %p139
      %p142 = scmp.ne.s32.totalorder %s127, %s141
      %p143 = scmp.eq.s32.totalorder %s28, 0
      %p144 = por %p142, %p143
      %s146 = sadd.s32 %s145, 1
      %p149 = scmp.eq.s32.totalorder %s22, 1
      %p150 = scmp.ne.s32.totalorder %s145, %s147
      %p151 = scmp.eq.s32.totalorder %s22, 0
      %p152 = por %p150, %p151
      %p153 = scmp.ne.s32.totalorder %s145, %s147
      %p154 = scmp.eq.s32.totalorder %s27, 1
      %p155 = por %p153, %p154
      %p156 = scmp.ne.s32.totalorder %s147, %s148
      %p157 = scmp.eq.s32.totalorder %s27, 0
      %p158 = por %p156, %p157
      %p159 = scmp.ne.s32.totalorder %s147, %s148
      %p160 = scmp.eq.s32.totalorder %s28, 1
      %p161 = por %p159, %p160
      %p163 = scmp.ne.s32.totalorder %s148, %s162
      %p164 = scmp.eq.s32.totalorder %s28, 0
      %p165 = por %p163, %p164
      %s167 = sadd.s32 %s166, 1
      %p170 = scmp.eq.s32.totalorder %s22, 1
      %p171 = scmp.ne.s32.totalorder %s166, %s168
      %p172 = scmp.eq.s32.totalorder %s22, 0
      %p173 = por %p171, %p172
      %p174 = scmp.ne.s32.totalorder %s166, %s168
      %p175 = scmp.eq.s32.totalorder %s27, 1
      %p176 = por %p174, %p175
      %p177 = scmp.ne.s32.totalorder %s168, %s169
      %p178 = scmp.eq.s32.totalorder %s27, 0
      %p179 = por %p177, %p178
      %p180 = scmp.ne.s32.totalorder %s168, %s169
      %p181 = scmp.eq.s32.totalorder %s28, 1
      %p182 = por %p180, %p181
      %p184 = scmp.ne.s32.totalorder %s169, %s183
      %p185 = scmp.eq.s32.totalorder %s28, 0
      %p186 = por %p184, %p185
      %s187 = ssub.s32 %s31, %s40
      %p188 = scmp.eq.s32.totalorder %s187, 0
      %s190 = sadd.s32 %s189, 1
      %s191 = scalar_select %p188, %s189, %s190
      %p194 = pneg %p188
      %p195 = scmp.eq.s32.totalorder %s22, 1
      %p196 = por %p194, %p195
      %p197 = scmp.ne.s32.totalorder %s189, %s192
      %p198 = scmp.eq.s32.totalorder %s22, 0
      %p199 = por %p197, %p198
      %p200 = scmp.ne.s32.totalorder %s189, %s192
      %p201 = scmp.eq.s32.totalorder %s27, 1
      %p202 = por %p200, %p201
      %p203 = scmp.ne.s32.totalorder %s192, %s193
      %p204 = scmp.eq.s32.totalorder %s27, 0
      %p205 = por %p203, %p204
      %p206 = scmp.ne.s32.totalorder %s192, %s193
      %p207 = scmp.eq.s32.totalorder %s28, 1
      %p208 = por %p206, %p207
      %p210 = scmp.ne.s32.totalorder %s193, %s209
      %p211 = scmp.eq.s32.totalorder %s28, 0
      %p212 = por %p210, %p211
      %s213 = ssub.s32 %s31, %s40
      %p214 = scmp.eq.s32.totalorder %s213, 0
      %s216 = sadd.s32 %s215, 1
      %s217 = scalar_select %p214, %s215, %s216
      %p220 = pneg %p214
      %p221 = scmp.eq.s32.totalorder %s22, 1
      %p222 = por %p220, %p221
      %p223 = scmp.ne.s32.totalorder %s215, %s218
      %p224 = scmp.eq.s32.totalorder %s22, 0
      %p225 = por %p223, %p224
      %p226 = scmp.ne.s32.totalorder %s215, %s218
      %p227 = scmp.eq.s32.totalorder %s27, 1
      %p228 = por %p226, %p227
      %p229 = scmp.ne.s32.totalorder %s218, %s219
      %p230 = scmp.eq.s32.totalorder %s27, 0
      %p231 = por %p229, %p230
      %p232 = scmp.ne.s32.totalorder %s218, %s219
      %p233 = scmp.eq.s32.totalorder %s28, 1
      %p234 = por %p232, %p233
      %p236 = scmp.ne.s32.totalorder %s219, %s235
      %p237 = scmp.eq.s32.totalorder %s28, 0
      %p238 = por %p236, %p237
      %s239 = ssub.s32 %s31, %s40
      %p240 = scmp.eq.s32.totalorder %s239, 0
      %s242 = sadd.s32 %s241, 1
      %s243 = scalar_select %p240, %s241, %s242
      %p246 = pneg %p240
      %p247 = scmp.eq.s32.totalorder %s22, 1
      %p248 = por %p246, %p247
      %p249 = scmp.ne.s32.totalorder %s241, %s244
      %p250 = scmp.eq.s32.totalorder %s22, 0
      %p251 = por %p249, %p250
      %p252 = scmp.ne.s32.totalorder %s241, %s244
      %p253 = scmp.eq.s32.totalorder %s27, 1
      %p254 = por %p252, %p253
      %p255 = scmp.ne.s32.totalorder %s244, %s245
      %p256 = scmp.eq.s32.totalorder %s27, 0
      %p257 = por %p255, %p256
      %p258 = scmp.ne.s32.totalorder %s244, %s245
      %p259 = scmp.eq.s32.totalorder %s28, 1
      %p260 = por %p258, %p259
      %p262 = scmp.ne.s32.totalorder %s245, %s261
      %p263 = scmp.eq.s32.totalorder %s28, 0
      %p264 = por %p262, %p263
      %s266 = sadd.s32 %s265, 1
      %p269 = scmp.eq.s32.totalorder %s22, 1
      %p270 = scmp.ne.s32.totalorder %s265, %s267
      %p271 = scmp.eq.s32.totalorder %s22, 0
      %p272 = por %p270, %p271
      %p273 = scmp.ne.s32.totalorder %s265, %s267
      %p274 = scmp.eq.s32.totalorder %s27, 1
      %p275 = por %p273, %p274
      %p276 = scmp.ne.s32.totalorder %s267, %s268
      %p277 = scmp.eq.s32.totalorder %s27, 0
      %p278 = por %p276, %p277
      %p279 = scmp.ne.s32.totalorder %s267, %s268
      %p280 = scmp.eq.s32.totalorder %s28, 1
      %p281 = por %p279, %p280
      %p283 = scmp.ne.s32.totalorder %s268, %s282
      %p284 = scmp.eq.s32.totalorder %s28, 0
      %p285 = por %p283, %p284
      %s287 = sadd.s32 %s286, 1
      %p290 = scmp.eq.s32.totalorder %s22, 1
      %p291 = scmp.ne.s32.totalorder %s286, %s288
      %p292 = scmp.eq.s32.totalorder %s22, 0
      %p293 = por %p291, %p292
      %p294 = scmp.ne.s32.totalorder %s286, %s288
      %p295 = scmp.eq.s32.totalorder %s27, 1
      %p296 = por %p294, %p295
      %p297 = scmp.ne.s32.totalorder %s288, %s289
      %p298 = scmp.eq.s32.totalorder %s27, 0
      %p299 = por %p297, %p298
      %p300 = scmp.ne.s32.totalorder %s288, %s289
      %p301 = scmp.eq.s32.totalorder %s28, 1
      %p302 = por %p300, %p301
      %p304 = scmp.ne.s32.totalorder %s289, %s303
      %p305 = scmp.eq.s32.totalorder %s28, 0
      %p306 = por %p304, %p305
      %s307 = ssub.s32 %s29, %s48
      %s308 = ssub.s32 %s30, %s44
      %s309 = sor.u32 %s307, %s308
      %p310 = scmp.eq.s32.totalorder %s309, 0
      %s312 = sadd.s32 %s311, 1
      %s313 = scalar_select %p310, %s311, %s312
      %p316 = pneg %p310
      %p317 = scmp.eq.s32.totalorder %s22, 1
      %p318 = por %p316, %p317
      %p319 = scmp.ne.s32.totalorder %s311, %s314
      %p320 = scmp.eq.s32.totalorder %s22, 0
      %p321 = por %p319, %p320
      %p322 = scmp.ne.s32.totalorder %s311, %s314
      %p323 = scmp.eq.s32.totalorder %s27, 1
      %p324 = por %p322, %p323
      %p325 = scmp.ne.s32.totalorder %s314, %s315
      %p326 = scmp.eq.s32.totalorder %s27, 0
      %p327 = por %p325, %p326
      %p328 = scmp.ne.s32.totalorder %s314, %s315
      %p329 = scmp.eq.s32.totalorder %s28, 1
      %p330 = por %p328, %p329
      %p332 = scmp.ne.s32.totalorder %s315, %s331
      %p333 = scmp.eq.s32.totalorder %s28, 0
      %p334 = por %p332, %p333
      %p335 = scmp.le.s32.totalorder 1, %s22
      %p336 = scmp.lt.s32.totalorder %s22, 3
      %p337 = pnand %p335, %p336
      %p338 = pneg %p337
      // Predicated region
      $region9: #{tpu_custom_call.1} parent=5 // pred_check
        _
      $region10: #{tpu_custom_call.1} parent=5 // pred_check_branch
        %340 = sbr.rel (%p337) target = $region12
      $region11: #{tpu_custom_call.1} parent=5 // pred_region
        %s341 = ssub.s32 %s22, 1
        // Predicated region
        $region13: #{tpu_custom_call.1} parent=11 // pred_check
          %p342 = pneg %p116
        $region14: #{tpu_custom_call.1} parent=11 // pred_check_branch
          %344 = sbr.rel (%p342) target = $region16
        $region15: #{tpu_custom_call.1} parent=11 // pred_region
          _
        $region16: #{tpu_custom_call.1} parent=11 // pred_fallthru
          _
        // Predicated region
        $region17: #{tpu_custom_call.1} parent=11 // pred_check
          %p345 = pneg %p137
        $region18: #{tpu_custom_call.1} parent=11 // pred_check_branch
          %347 = sbr.rel (%p345) target = $region20
        $region19: #{tpu_custom_call.1} parent=11 // pred_region
          _
        $region20: #{tpu_custom_call.1} parent=11 // pred_fallthru
          _
        // Predicated region
        $region21: #{tpu_custom_call.1} parent=11 // pred_check
          %p348 = pneg %p158
        $region22: #{tpu_custom_call.1} parent=11 // pred_check_branch
          %350 = sbr.rel (%p348) target = $region24
        $region23: #{tpu_custom_call.1} parent=11 // pred_region
          _
        $region24: #{tpu_custom_call.1} parent=11 // pred_fallthru
          _
        // Predicated region
        $region25: #{tpu_custom_call.1} parent=11 // pred_check
          %p351 = pneg %p179
        $region26: #{tpu_custom_call.1} parent=11 // pred_check_branch
          %353 = sbr.rel (%p351) target = $region28
        $region27: #{tpu_custom_call.1} parent=11 // pred_region
          _
        $region28: #{tpu_custom_call.1} parent=11 // pred_fallthru
          _
        // Predicated region
        $region29: #{tpu_custom_call.1} parent=11 // pred_check
          %p354 = pneg %p205
        $region30: #{tpu_custom_call.1} parent=11 // pred_check_branch
          %356 = sbr.rel (%p354) target = $region32
        $region31: #{tpu_custom_call.1} parent=11 // pred_region
          %p357 = scmp.lt.s32.totalorder %s34, 0
          %s358 = scalar_select %p357, %s34, 0
          %s359 = smul.addr %s358, 4
          %s360 = scalar_lea.vmem %s6, %s359
        $region32: #{tpu_custom_call.1} parent=11 // pred_fallthru
          _
        // Predicated region
        $region33: #{tpu_custom_call.1} parent=11 // pred_check
          %p361 = pneg %p231
        $region34: #{tpu_custom_call.1} parent=11 // pred_check_branch
          %363 = sbr.rel (%p361) target = $region36
        $region35: #{tpu_custom_call.1} parent=11 // pred_region
          %365 = vsyncadd [#allocation7], 0
          %s366 = scalar_lea.hbm %s7, %s34
          %s368 = sshll.u32 %s366, 4
          %s369 = int_to_ptr.hbm [resolvable:$true] %s368
          %s370 = sshll.u32 [#allocation6], 4
          %s371 = int_to_ptr.vmem [resolvable:$true] %s370
          %373 = dma.hbm_to_vmem [thread:$0]  %s369, 16, %s371, [#allocation7]
        $region36: #{tpu_custom_call.1} parent=11 // pred_fallthru
          _
        // Predicated region
        $region37: #{tpu_custom_call.1} parent=11 // pred_check
          %p374 = pneg %p257
        $region38: #{tpu_custom_call.1} parent=11 // pred_check_branch
          %376 = sbr.rel (%p374) target = $region40
        $region39: #{tpu_custom_call.1} parent=11 // pred_region
          %s377 = smul.u32 16, %s34
          %p378 = scmp.lt.s32.totalorder %s377, 15
          %s379 = scalar_select %p378, %s377, 15
          %s380 = smul.addr %s379, 4
          %s381 = scalar_lea.vmem %s8, %s380
          %s382 = smul.u32 16, %s34
        $region40: #{tpu_custom_call.1} parent=11 // pred_fallthru
          _
        // Predicated region
        $region41: #{tpu_custom_call.1} parent=11 // pred_check
          %p383 = pneg %p278
        $region42: #{tpu_custom_call.1} parent=11 // pred_check_branch
          %385 = sbr.rel (%p383) target = $region44
        $region43: #{tpu_custom_call.1} parent=11 // pred_region
          %387 = vsyncadd [#allocation10], 0
          %s389 = sshll.u32 %s9, 4
          %s390 = int_to_ptr.hbm [resolvable:$true] %s389
          %s391 = sshll.u32 [#allocation9], 4
          %s392 = int_to_ptr.vmem [resolvable:$true] %s391
          %394 = dma.hbm_to_vmem [thread:$0]  %s390, 16, %s392, [#allocation10]
        $region44: #{tpu_custom_call.1} parent=11 // pred_fallthru
          _
        // Predicated region
        $region45: #{tpu_custom_call.1} parent=11 // pred_check
          %p395 = pneg %p299
        $region46: #{tpu_custom_call.1} parent=11 // pred_check_branch
          %397 = sbr.rel (%p395) target = $region48
        $region47: #{tpu_custom_call.1} parent=11 // pred_region
          _
        $region48: #{tpu_custom_call.1} parent=11 // pred_fallthru
          _
      $region12: #{tpu_custom_call.1} parent=5 // pred_fallthru
        _
      %p398 = scmp.lt.s32.totalorder %s22, 2
      // Predicated region
      $region49: #{tpu_custom_call.1} parent=5 // pred_check
        %p399 = pneg %p398
      $region50: #{tpu_custom_call.1} parent=5 // pred_check_branch
        %401 = sbr.rel (%p399) target = $region52
      $region51: #{tpu_custom_call.1} parent=5 // pred_region
        // Predicated region
        $region53: #{tpu_custom_call.1} parent=51 // pred_check
          %p402 = pneg %p63
        $region54: #{tpu_custom_call.1} parent=51 // pred_check_branch
          %404 = sbr.rel (%p402) target = $region56
        $region55: #{tpu_custom_call.1} parent=51 // pred_region
          %p405 = scmp.lt.s32.totalorder %s29, 1
          %s406 = scalar_select %p405, %s29, 1
          %p407 = scmp.lt.s32.totalorder %s30, 0
          %s408 = scalar_select %p407, %s30, 0
          %s409 = sadd.s32 %s408, %s406
          %s410 = smul.addr %s409, 4
          %s411 = scalar_lea.vmem %s0, %s410
        $region56: #{tpu_custom_call.1} parent=51 // pred_fallthru
          _
        // Predicated region
        $region57: #{tpu_custom_call.1} parent=51 // pred_check
          %p412 = pneg %p89
        $region58: #{tpu_custom_call.1} parent=51 // pred_check_branch
          %414 = sbr.rel (%p412) target = $region60
        $region59: #{tpu_custom_call.1} parent=51 // pred_region
          %p415 = scmp.lt.s32.totalorder %s29, 1
          %s416 = scalar_select %p415, %s29, 1
          %s417 = smul.addr %s416, 4
          %s418 = scalar_lea.vmem %s1, %s417
        $region60: #{tpu_custom_call.1} parent=51 // pred_fallthru
          _
      $region52: #{tpu_custom_call.1} parent=5 // pred_fallthru
        _
      %p419 = scmp.le.s32.totalorder 1, %s22
      %p420 = scmp.lt.s32.totalorder %s22, 3
      %p421 = pnand %p419, %p420
      %p422 = pneg %p421
      // Predicated region
      $region61: #{tpu_custom_call.1} parent=5 // pred_check
        _
      $region62: #{tpu_custom_call.1} parent=5 // pred_check_branch
        %424 = sbr.rel (%p421) target = $region64
      $region63: #{tpu_custom_call.1} parent=5 // pred_region
        %s425 = ssub.s32 %s22, 1
        // Predicated region
        $region65: #{tpu_custom_call.1} parent=63 // pred_check
          %p426 = pneg %p231
        $region66: #{tpu_custom_call.1} parent=63 // pred_check_branch
          %428 = sbr.rel (%p426) target = $region68
        $region67: #{tpu_custom_call.1} parent=63 // pred_region
          %430 = dma.done [#allocation7], 16
        $region68: #{tpu_custom_call.1} parent=63 // pred_fallthru
          _
        // Predicated region
        $region69: #{tpu_custom_call.1} parent=63 // pred_check
          %p431 = pneg %p278
        $region70: #{tpu_custom_call.1} parent=63 // pred_check_branch
          %433 = sbr.rel (%p431) target = $region72
        $region71: #{tpu_custom_call.1} parent=63 // pred_region
          %435 = dma.done [#allocation10], 16
        $region72: #{tpu_custom_call.1} parent=63 // pred_fallthru
          _
        %p436 = scmp.lt.s32.totalorder %s32, 1
        %s437 = scalar_select %p436, %s32, 1
        %p438 = scmp.lt.s32.totalorder %s33, 0
        %s439 = scalar_select %p438, %s33, 0
        %s440 = sadd.s32 %s439, %s437
        %s441 = smul.addr %s440, 4
        %s442 = scalar_lea.vmem %s0, %s441
        %p443 = pneg %p69
        %p444 = pneg %p66
        %p445 = scmp.lt.s32.totalorder %s32, 1
        %s446 = scalar_select %p445, %s32, 1
        %s447 = smul.addr %s446, 4
        %s448 = scalar_lea.vmem %s1, %s447
        %p449 = pneg %p95
        %p450 = pneg %p92
        %p451 = pneg %p116
        %p452 = pneg %p113
        %p453 = pneg %p137
        %p454 = pneg %p134
        %p455 = pneg %p158
        %p456 = pneg %p155
        %p457 = pneg %p179
        %p458 = pneg %p176
        %p459 = scmp.lt.s32.totalorder %s34, 0
        %s460 = scalar_select %p459, %s34, 0
        %s461 = smul.addr %s460, 4
        %s462 = scalar_lea.vmem %s6, %s461
        %p463 = pneg %p205
        %p464 = pneg %p202
        %p465 = pneg %p231
        %p466 = pneg %p228
        %s467 = smul.u32 16, %s34
        %p468 = scmp.lt.s32.totalorder %s467, 15
        %s469 = scalar_select %p468, %s467, 15
        %s470 = smul.addr %s469, 4
        %s471 = scalar_lea.vmem %s8, %s470
        %p472 = pneg %p257
        %p473 = pneg %p254
        %p474 = pneg %p278
        %p475 = pneg %p275
        %p476 = pneg %p299
        %p477 = pneg %p296
        %p478 = pneg %p327
        %p479 = pneg %p324
        %s480 = sand.u32 %s314, 1
        %s481 = scalar_lea.sflag [#allocation8], %s480
        %s482 = sand.u32 %s314, 1
        %s483 = smul.addr %s482, 4
        %s484 = scalar_lea.vmem [#allocation11], %s483
        %p485 = scmp.lt.s32.totalorder %s32, 1
        %s486 = scalar_select %p485, %s32, 1
        %p487 = scmp.lt.s32.totalorder %s33, 0
        %s488 = scalar_select %p487, %s33, 0
        %s489 = sadd.s32 %s488, %s486
        %s490 = smul.addr %s489, 4
        %s491 = scalar_lea.vmem %s0, %s490
        %p492 = scmp.lt.s32.totalorder %s32, 1
        %s493 = scalar_select %p492, %s32, 1
        %s494 = smul.addr %s493, 4
        %s495 = scalar_lea.vmem %s1, %s494
        %p496 = scmp.lt.s32.totalorder %s34, 0
        %s497 = scalar_select %p496, %s34, 0
        %s498 = smul.addr %s497, 4
        %s499 = scalar_lea.vmem %s6, %s498
        %s500 = smul.u32 16, %s34
        %p501 = scmp.lt.s32.totalorder %s500, 15
        %s502 = scalar_select %p501, %s500, 15
        %s503 = smul.addr %s502, 4
        %s504 = scalar_lea.vmem %s8, %s503
        %s505 = smul.u32 16, %s34
        %v507 = vld [vmem:[%s10] sm:$0xf]
        %p508 = scmp.eq.s32.totalorder %s33, 0
        %p509 = scmp.eq.s32.totalorder %s34, 0
        %p510 = pnand %p508, %p509
        %p511 = pneg %p510
        // Predicated region
        $region73: #{tpu_custom_call.1} parent=63 // pred_check
          _
        $region74: #{tpu_custom_call.1} parent=63 // pred_check_branch
          %513 = sbr.rel (%p510) target = $region76
        $region75: #{tpu_custom_call.1} parent=63 // pred_region
          %v514 = vld [vmem:[%s495] sm:$0xf]
          %v515 = vld [vmem:[%s5] sm:$0x7]
          %v516 = vld [vmem:[%s3] sm:$0xf]
          %v517 = vld [vmem:[%s3 + $0x4] sm:$0xf]
          %v518 = vld [vmem:[%s3 + $0x8] sm:$0xf]
          %v519 = vld [vmem:[%s3 + $0xc] sm:$0xf]
          %v520 = vperm.slane %v515, 1
          %v525 = vunpack.c.l.b16 %v516
          %v526 = vunpack.c.l.b16 %v517
          %v527 = vunpack.c.l.b16 %v518
          %v528 = vunpack.c.l.b16 %v519
          %v529 = vpack.c.b16 %v526, %v525
          %v530 = vpack.c.b16 %v528, %v527
          %vm533 = vcmask 261120
          %v535 = vsel %vm533, %v514, 0
          %537 = vmatpush.bf16.msra.mxu0 0
          %538 = vmatpush.bf16.msra.mxu0 0
          %539 = vmatpush.bf16.msra.mxu0 0
          %540 = vmatpush.bf16.msra.mxu0 0
          %541 = vmatpush.bf16.msra.mxu0 0
          %542 = vmatpush.bf16.msra.mxu0 0
          %543 = vmatpush.bf16.msra.mxu0 %v530
          %544 = vmatpush.bf16.msra.mxu0 %v529
          %545 = vmatmul.bf16.gmra.mxu0 %v535
          %v546 = vpop.f32.mrf.mxu0
          %v547 = vadd.f32 %v520, %v546
          %v548 = vpop.f32.mrf.mxu0
          %549 = vdwg.mxu0
          %v550 = vld [vmem:[%s4] sm:$0xf]
          %v551 = vld [vmem:[%s4 + $0x4] sm:$0xf]
          %v552 = vld [vmem:[%s4 + $0x8] sm:$0xf]
          %v553 = vld [vmem:[%s4 + $0xc] sm:$0xf]
          %v554 = vperm.slane %v515, 2
          %v559 = vunpack.c.l.b16 %v550
          %v560 = vunpack.c.l.b16 %v551
          %v561 = vunpack.c.l.b16 %v552
          %v562 = vunpack.c.l.b16 %v553
          %v563 = vpack.c.b16 %v560, %v559
          %v564 = vpack.c.b16 %v562, %v561
          %567 = vmatpush.bf16.msra.mxu0 0
          %568 = vmatpush.bf16.msra.mxu0 0
          %569 = vmatpush.bf16.msra.mxu0 0
          %570 = vmatpush.bf16.msra.mxu0 0
          %571 = vmatpush.bf16.msra.mxu0 0
          %572 = vmatpush.bf16.msra.mxu0 0
          %573 = vmatpush.bf16.msra.mxu0 %v564
          %574 = vmatpush.bf16.msra.mxu0 %v563
          %575 = vmatmul.bf16.gmra.mxu0 %v535
          %v576 = vpop.f32.mrf.mxu0
          %v577 = vadd.f32 %v554, %v576
          %v578 = vpop.f32.mrf.mxu0
          %579 = vdwg.mxu0
          %580 = vxpose.xlu0.b32.start [1/16] %v547, 128
          %581 = vxpose.xlu0.b32.cont [2/16] 0.0, 128
          %582 = vxpose.xlu0.b32.cont [3/16] 0.0, 128
          %583 = vxpose.xlu0.b32.cont [4/16] 0.0, 128
          %584 = vxpose.xlu0.b32.cont [5/16] 0.0, 128
          %585 = vxpose.xlu0.b32.cont [6/16] 0.0, 128
          %586 = vxpose.xlu0.b32.cont [7/16] 0.0, 128
          %587 = vxpose.xlu0.b32.cont [8/16] 0.0, 128
          %588 = vxpose.xlu0.b32.cont [9/16] 0.0, 128
          %589 = vxpose.xlu0.b32.cont [10/16] 0.0, 128
          %590 = vxpose.xlu0.b32.cont [11/16] 0.0, 128
          %591 = vxpose.xlu0.b32.cont [12/16] 0.0, 128
          %592 = vxpose.xlu0.b32.cont [13/16] 0.0, 128
          %593 = vxpose.xlu0.b32.cont [14/16] 0.0, 128
          %594 = vxpose.xlu0.b32.cont [15/16] 0.0, 128
          %595 = vxpose.xlu0.b32.end [16/16] 0.0, 128
          %v596 = vpop.trf.xlu0
          %v597 = vpop.trf.xlu0
          %v598 = vpop.trf.xlu0
          %v599 = vpop.trf.xlu0
          %v600 = vpop.trf.xlu0
          %v601 = vpop.trf.xlu0
          %v602 = vpop.trf.xlu0
          %v603 = vpop.trf.xlu0
          %v604 = vpop.trf.xlu0
          %v605 = vpop.trf.xlu0
          %v606 = vpop.trf.xlu0
          %v607 = vpop.trf.xlu0
          %v608 = vpop.trf.xlu0
          %v609 = vpop.trf.xlu0
          %v610 = vpop.trf.xlu0
          %v611 = vpop.trf.xlu0
          %v612 = vpack.c.bf16 %v596, %v596
          %v613 = vpack.c.bf16 %v597, %v597
          %v614 = vpack.c.bf16 %v598, %v598
          %v615 = vpack.c.bf16 %v599, %v599
          %vm616 = vcmask 60416
          %617 = vst.msk [vmem:[#allocation2] sm:$0xf] %vm616, %v612
          %618 = vst.msk [vmem:[#allocation2 + $0x4] sm:$0xf] %vm616, %v613
          %619 = vst.msk [vmem:[#allocation2 + $0x8] sm:$0xf] %vm616, %v614
          %620 = vst.msk [vmem:[#allocation2 + $0xc] sm:$0xf] %vm616, %v615
          %v621 = vpack.c.bf16 %v577, %v577
          %vm622 = vcmask 257024
          %623 = vst.msk [vmem:[#allocation3] sm:$0xf] %vm622, %v621
        $region76: #{tpu_custom_call.1} parent=63 // pred_fallthru
          _
        // Predicated region
        $region77: #{tpu_custom_call.1} parent=63 // pred_check
          %p624 = pneg %p509
        $region78: #{tpu_custom_call.1} parent=63 // pred_check_branch
          %626 = sbr.rel (%p624) target = $region80
        $region79: #{tpu_custom_call.1} parent=63 // pred_region
          %v627 = vld [vmem:[%s491] sm:$0xf]
          %v628 = vld [vmem:[%s5] sm:$0x7]
          %v629 = vld [vmem:[%s2] sm:$0xf]
          %v630 = vld [vmem:[%s2 + $0x4] sm:$0xf]
          %v631 = vld [vmem:[%s2 + $0x8] sm:$0xf]
          %v632 = vld [vmem:[%s2 + $0xc] sm:$0xf]
          %v633 = vperm.slane %v628, 0
          %v638 = vunpack.c.l.b16 %v629
          %v639 = vunpack.c.l.b16 %v630
          %v640 = vunpack.c.l.b16 %v631
          %v641 = vunpack.c.l.b16 %v632
          %v642 = vpack.c.b16 %v639, %v638
          %v643 = vpack.c.b16 %v641, %v640
          %vm646 = vcmask 261120
          %v648 = vsel %vm646, %v627, 0
          %650 = vmatpush.bf16.msra.mxu0 0
          %651 = vmatpush.bf16.msra.mxu0 0
          %652 = vmatpush.bf16.msra.mxu0 0
          %653 = vmatpush.bf16.msra.mxu0 0
          %654 = vmatpush.bf16.msra.mxu0 0
          %655 = vmatpush.bf16.msra.mxu0 0
          %656 = vmatpush.bf16.msra.mxu0 %v643
          %657 = vmatpush.bf16.msra.mxu0 %v642
          %658 = vmatmul.bf16.gmra.mxu0 %v648
          %v659 = vpop.f32.mrf.mxu0
          %v660 = vadd.f32 %v633, %v659
          %v661 = vpop.f32.mrf.mxu0
          %662 = vdwg.mxu0
          %v663 = vpack.c.bf16 %v660, %v660
          %v664 = vld [vmem:[#allocation2] sm:$0xf]
          %vm665 = vcmask 64512
          %v667 = vsel %vm665, %v663, 0
          %vm669 = vcmask 1043456
          %v671 = vsel %vm669, %v664, 0
          %673 = vmatpush.bf16.msra.mxu0 0
          %674 = vmatpush.bf16.msra.mxu0 0
          %675 = vmatpush.bf16.msra.mxu0 0
          %676 = vmatpush.bf16.msra.mxu0 0
          %677 = vmatpush.bf16.msra.mxu0 0
          %678 = vmatpush.bf16.msra.mxu0 0
          %679 = vmatpush.bf16.msra.mxu0 0
          %680 = vmatpush.bf16.msra.mxu0 %v671
          %681 = vmatmul.bf16.gmra.mxu0 %v667
          %v682 = vpop.f32.mrf.mxu0
          %v683 = vadd.f32 0.0, %v682
          %v684 = vpop.f32.mrf.mxu0
          %685 = vdwg.mxu0
          %v686 = vmul.f32 %v683, 0.35355338
          %v687 = vsel %vm665, %v686, -inf
          %688 = vmax.xlane.f32.xlu0 %v687
          %v689 = vpop.xlane.xlu0 %688
          %v690 = vsub.f32 %v686, %v689
          %v691 = vmul.f32 %v690, 1.442695
          %v692 = vpow.pop %v691
          %v693 = vsel %vm665, %v692, 0.0
          %694 = vadd.xlane.f32.xlu0 %v693
          %v695 = vpop.xlane.xlu0 %694
          %v696 = vrcp.pop %v695
          %v697 = vmul.f32 %v692, %v696
          %v698 = vpack.c.bf16 %v697, %v697
          %v699 = vld [vmem:[#allocation3] sm:$0xf]
          %v701 = vsel %vm665, %v698, 0
          %v704 = vsel %vm669, %v699, 0
          %706 = vmatpush.bf16.msra.mxu0 0
          %707 = vmatpush.bf16.msra.mxu0 0
          %708 = vmatpush.bf16.msra.mxu0 0
          %709 = vmatpush.bf16.msra.mxu0 0
          %710 = vmatpush.bf16.msra.mxu0 0
          %711 = vmatpush.bf16.msra.mxu0 0
          %712 = vmatpush.bf16.msra.mxu0 0
          %713 = vmatpush.bf16.msra.mxu0 %v704
          %714 = vmatmul.bf16.gmra.mxu0 %v701
          %v715 = vpop.f32.mrf.mxu0
          %v716 = vadd.f32 0.0, %v715
          %v717 = vpop.f32.mrf.mxu0
          %718 = vdwg.mxu0
          %719 = vst.msk [vmem:[#allocation5] sm:$0xff] %vm665, %v716
          %v720 = vld [vmem:[#allocation2 + $0x4] sm:$0xf]
          %v722 = vunpack.c.l.b16 %v663
          %v723 = vpack.c.b16 %v722, %v722
          %724 = vrot.lane.b32.xlu0 %v723, 120
          %v725 = vpop.permute.xlu0 %724
          %v727 = vsel %vm665, %v725, 0
          %v730 = vsel %vm669, %v720, 0
          %732 = vmatpush.bf16.msra.mxu0 0
          %733 = vmatpush.bf16.msra.mxu0 0
          %734 = vmatpush.bf16.msra.mxu0 0
          %735 = vmatpush.bf16.msra.mxu0 0
          %736 = vmatpush.bf16.msra.mxu0 0
          %737 = vmatpush.bf16.msra.mxu0 0
          %738 = vmatpush.bf16.msra.mxu0 0
          %739 = vmatpush.bf16.msra.mxu0 %v730
          %740 = vmatmul.bf16.gmra.mxu0 %v727
          %v741 = vpop.f32.mrf.mxu0
          %v742 = vadd.f32 0.0, %v741
          %v743 = vpop.f32.mrf.mxu0
          %744 = vdwg.mxu0
          %v745 = vmul.f32 %v742, 0.35355338
          %v746 = vsel %vm665, %v745, -inf
          %747 = vmax.xlane.f32.xlu0 %v746
          %v748 = vpop.xlane.xlu0 %747
          %v749 = vsub.f32 %v745, %v748
          %v750 = vmul.f32 %v749, 1.442695
          %v751 = vpow.pop %v750
          %v752 = vsel %vm665, %v751, 0.0
          %753 = vadd.xlane.f32.xlu0 %v752
          %v754 = vpop.xlane.xlu0 %753
          %v755 = vrcp.pop %v754
          %v756 = vmul.f32 %v751, %v755
          %v757 = vpack.c.bf16 %v756, %v756
          %v758 = vld [vmem:[#allocation3] sm:$0xf]
          %v760 = vunpack.c.l.b16 %v758
          %v761 = vpack.c.b16 %v760, %v760
          %762 = vrot.lane.b32.xlu0 %v761, 120
          %v763 = vpop.permute.xlu0 %762
          %v765 = vsel %vm665, %v757, 0
          %v768 = vsel %vm669, %v763, 0
          %770 = vmatpush.bf16.msra.mxu0 0
          %771 = vmatpush.bf16.msra.mxu0 0
          %772 = vmatpush.bf16.msra.mxu0 0
          %773 = vmatpush.bf16.msra.mxu0 0
          %774 = vmatpush.bf16.msra.mxu0 0
          %775 = vmatpush.bf16.msra.mxu0 0
          %776 = vmatpush.bf16.msra.mxu0 0
          %777 = vmatpush.bf16.msra.mxu0 %v768
          %778 = vmatmul.bf16.gmra.mxu0 %v765
          %v779 = vpop.f32.mrf.mxu0
          %v780 = vadd.f32 0.0, %v779
          %v781 = vpop.f32.mrf.mxu0
          %782 = vdwg.mxu0
          %784 = vrot.lane.b32.xlu0 %v780, 8
          %v785 = vpop.permute.xlu0 %784
          %vm787 = vcmask 130112
          %788 = vst.msk [vmem:[#allocation5] sm:$0xff] %vm787, %v785
          %v789 = vld [vmem:[#allocation2 + $0x8] sm:$0xf]
          %790 = vrot.lane.b32.xlu0 %v723, 112
          %v791 = vpop.permute.xlu0 %790
          %v793 = vsel %vm665, %v791, 0
          %v796 = vsel %vm669, %v789, 0
          %798 = vmatpush.bf16.msra.mxu0 0
          %799 = vmatpush.bf16.msra.mxu0 0
          %800 = vmatpush.bf16.msra.mxu0 0
          %801 = vmatpush.bf16.msra.mxu0 0
          %802 = vmatpush.bf16.msra.mxu0 0
          %803 = vmatpush.bf16.msra.mxu0 0
          %804 = vmatpush.bf16.msra.mxu0 0
          %805 = vmatpush.bf16.msra.mxu0 %v796
          %806 = vmatmul.bf16.gmra.mxu0 %v793
          %v807 = vpop.f32.mrf.mxu0
          %v808 = vadd.f32 0.0, %v807
          %v809 = vpop.f32.mrf.mxu0
          %810 = vdwg.mxu0
          %v811 = vmul.f32 %v808, 0.35355338
          %v812 = vsel %vm665, %v811, -inf
          %813 = vmax.xlane.f32.xlu0 %v812
          %v814 = vpop.xlane.xlu0 %813
          %v815 = vsub.f32 %v811, %v814
          %v816 = vmul.f32 %v815, 1.442695
          %v817 = vpow.pop %v816
          %v818 = vsel %vm665, %v817, 0.0
          %819 = vadd.xlane.f32.xlu0 %v818
          %v820 = vpop.xlane.xlu0 %819
          %v821 = vrcp.pop %v820
          %v822 = vmul.f32 %v817, %v821
          %v823 = vpack.c.bf16 %v822, %v822
          %v824 = vld [vmem:[#allocation3] sm:$0xf]
          %v826 = vunpack.c.l.b16 %v824
          %v827 = vpack.c.b16 %v826, %v826
          %828 = vrot.lane.b32.xlu0 %v827, 112
          %v829 = vpop.permute.xlu0 %828
          %v831 = vsel %vm665, %v823, 0
          %v834 = vsel %vm669, %v829, 0
          %836 = vmatpush.bf16.msra.mxu0 0
          %837 = vmatpush.bf16.msra.mxu0 0
          %838 = vmatpush.bf16.msra.mxu0 0
          %839 = vmatpush.bf16.msra.mxu0 0
          %840 = vmatpush.bf16.msra.mxu0 0
          %841 = vmatpush.bf16.msra.mxu0 0
          %842 = vmatpush.bf16.msra.mxu0 0
          %843 = vmatpush.bf16.msra.mxu0 %v834
          %844 = vmatmul.bf16.gmra.mxu0 %v831
          %v845 = vpop.f32.mrf.mxu0
          %v846 = vadd.f32 0.0, %v845
          %v847 = vpop.f32.mrf.mxu0
          %848 = vdwg.mxu0
          %850 = vrot.lane.b32.xlu0 %v846, 16
          %v851 = vpop.permute.xlu0 %850
          %vm853 = vcmask 195712
          %854 = vst.msk [vmem:[#allocation5] sm:$0xff] %vm853, %v851
          %v855 = vld [vmem:[#allocation2 + $0xc] sm:$0xf]
          %856 = vrot.lane.b32.xlu0 %v723, 104
          %v857 = vpop.permute.xlu0 %856
          %v859 = vsel %vm665, %v857, 0
          %v862 = vsel %vm669, %v855, 0
          %864 = vmatpush.bf16.msra.mxu0 0
          %865 = vmatpush.bf16.msra.mxu0 0
          %866 = vmatpush.bf16.msra.mxu0 0
          %867 = vmatpush.bf16.msra.mxu0 0
          %868 = vmatpush.bf16.msra.mxu0 0
          %869 = vmatpush.bf16.msra.mxu0 0
          %870 = vmatpush.bf16.msra.mxu0 0
          %871 = vmatpush.bf16.msra.mxu0 %v862
          %872 = vmatmul.bf16.gmra.mxu0 %v859
          %v873 = vpop.f32.mrf.mxu0
          %v874 = vadd.f32 0.0, %v873
          %v875 = vpop.f32.mrf.mxu0
          %876 = vdwg.mxu0
          %v877 = vmul.f32 %v874, 0.35355338
          %v878 = vsel %vm665, %v877, -inf
          %879 = vmax.xlane.f32.xlu0 %v878
          %v880 = vpop.xlane.xlu0 %879
          %v881 = vsub.f32 %v877, %v880
          %v882 = vmul.f32 %v881, 1.442695
          %v883 = vpow.pop %v882
          %v884 = vsel %vm665, %v883, 0.0
          %885 = vadd.xlane.f32.xlu0 %v884
          %v886 = vpop.xlane.xlu0 %885
          %v887 = vrcp.pop %v886
          %v888 = vmul.f32 %v883, %v887
          %v889 = vpack.c.bf16 %v888, %v888
          %v890 = vld [vmem:[#allocation3] sm:$0xf]
          %v892 = vunpack.c.l.b16 %v890
          %v893 = vpack.c.b16 %v892, %v892
          %894 = vrot.lane.b32.xlu0 %v893, 104
          %v895 = vpop.permute.xlu0 %894
          %v897 = vsel %vm665, %v889, 0
          %v900 = vsel %vm669, %v895, 0
          %902 = vmatpush.bf16.msra.mxu0 0
          %903 = vmatpush.bf16.msra.mxu0 0
          %904 = vmatpush.bf16.msra.mxu0 0
          %905 = vmatpush.bf16.msra.mxu0 0
          %906 = vmatpush.bf16.msra.mxu0 0
          %907 = vmatpush.bf16.msra.mxu0 0
          %908 = vmatpush.bf16.msra.mxu0 0
          %909 = vmatpush.bf16.msra.mxu0 %v900
          %910 = vmatmul.bf16.gmra.mxu0 %v897
          %v911 = vpop.f32.mrf.mxu0
          %v912 = vadd.f32 0.0, %v911
          %v913 = vpop.f32.mrf.mxu0
          %914 = vdwg.mxu0
          %916 = vrot.lane.b32.xlu0 %v912, 24
          %v917 = vpop.permute.xlu0 %916
          %vm919 = vcmask 261312
          %920 = vst.msk [vmem:[#allocation5] sm:$0xff] %vm919, %v917
          %v921 = vld [vmem:[#allocation5] sm:$0xff]
          %v922 = vunpack.c.l.bf16 %v627
          %v923 = vadd.f32 %v921, %v922
          %v924 = vsel %vm646, %v923, 0.0
          %925 = vadd.xlane.f32.xlu0 %v924
          %v926 = vpop.xlane.xlu0 %925
          %v927 = vrcp.pop 32.0
          %v928 = vmul.f32 32.0, %v927
          %v929 = vsub.f32 1.0, %v928
          %v930 = vmul.f32 %v927, %v929
          %v931 = vadd.f32 %v927, %v930
          %vm932 = vweird.f32 %v927
          %v933 = vsel %vm932, %v927, %v931
          %v934 = vmul.f32 %v926, %v933
          %v935 = vsub.f32 %v923, %v934
          %v936 = vmul.f32 %v935, %v935
          %v937 = vsel %vm646, %v936, 0.0
          %938 = vadd.xlane.f32.xlu0 %v937
          %v939 = vpop.xlane.xlu0 %938
          %v940 = vmul.f32 %v939, %v933
          %v941 = vadd.f32 %v940, 1e-05
          %v942 = vrsqrt.pop %v941
          %v943 = vmul.f32 %v942, %v941
          %v944 = vmul.f32 %v943, %v942
          %v945 = vmul.f32 0.5, %v944
          %v946 = vsub.f32 1.5, %v945
          %v947 = vmul.f32 %v942, %v946
          %vm948 = vweird.f32 %v941
          %vm949 = vweird.f32 %v942
          %vm950 = vmor %vm948, %vm949
          %v951 = vsel %vm950, %v942, %v947
          %v952 = vmul.f32 %v935, %v951
          %v953 = vperm.slane %v507, 0
          %v954 = vmul.f32 %v952, %v953
          %v955 = vperm.slane %v507, 1
          %v956 = vadd.f32 %v954, %v955
          %957 = vst.msk [vmem:[#allocation4] sm:$0xff] %vm646, %v956
          %958 = vst.msk [vmem:[#allocation5] sm:$0xff] %vm646, 0.0
        $region80: #{tpu_custom_call.1} parent=63 // pred_fallthru
          _
        %v959 = vld [vmem:[#allocation4] sm:$0xff]
        %v960 = vpack.c.bf16 %v959, %v959
        %v961 = vld [vmem:[%s499] sm:$0xf]
        %v962 = vld [vmem:[%s499 + $0x4] sm:$0xf]
        %v963 = vld [vmem:[%s499 + $0x8] sm:$0xf]
        %v964 = vld [vmem:[%s499 + $0xc] sm:$0xf]
        %v965 = vld [vmem:[#allocation6] sm:$0x1]
        %v967 = vperm.slane %v965, 0
        %v973 = vunpack.c.l.b16 %v961
        %v974 = vunpack.c.l.b16 %v962
        %v975 = vunpack.c.l.b16 %v963
        %v976 = vunpack.c.l.b16 %v964
        %v977 = vpack.c.b16 %v974, %v973
        %v978 = vpack.c.b16 %v976, %v975
        %vm981 = vcmask 261120
        %v983 = vsel %vm981, %v960, 0
        %985 = vmatpush.bf16.msra.mxu0 0
        %986 = vmatpush.bf16.msra.mxu0 0
        %987 = vmatpush.bf16.msra.mxu0 0
        %988 = vmatpush.bf16.msra.mxu0 0
        %989 = vmatpush.bf16.msra.mxu0 0
        %990 = vmatpush.bf16.msra.mxu0 0
        %991 = vmatpush.bf16.msra.mxu0 %v978
        %992 = vmatpush.bf16.msra.mxu0 %v977
        %993 = vmatmul.bf16.gmra.mxu0 %v983
        %v994 = vpop.f32.mrf.mxu0
        %v995 = vadd.f32 %v967, %v994
        %v996 = vpop.f32.mrf.mxu0
        %997 = vdwg.mxu0
        %v998 = vmax.f32 %v995, 0.0
        %v999 = vld [vmem:[#allocation5] sm:$0xff]
        %v1000 = vpack.c.bf16 %v998, %v998
        %v1001 = vld [vmem:[%s504] sm:$0xf]
        %v1002 = vld [vmem:[%s504 + $0x4] sm:$0xf]
        %v1003 = vld [vmem:[%s504 + $0x8] sm:$0xf]
        %v1004 = vld [vmem:[%s504 + $0xc] sm:$0xf]
        %v1005 = vld [vmem:[%s504 + $0x10] sm:$0xf]
        %v1006 = vld [vmem:[%s504 + $0x14] sm:$0xf]
        %v1007 = vld [vmem:[%s504 + $0x18] sm:$0xf]
        %v1008 = vld [vmem:[%s504 + $0x1c] sm:$0xf]
        %v1009 = vld [vmem:[%s504 + $0x20] sm:$0xf]
        %v1010 = vld [vmem:[%s504 + $0x24] sm:$0xf]
        %v1011 = vld [vmem:[%s504 + $0x28] sm:$0xf]
        %v1012 = vld [vmem:[%s504 + $0x2c] sm:$0xf]
        %v1013 = vld [vmem:[%s504 + $0x30] sm:$0xf]
        %v1014 = vld [vmem:[%s504 + $0x34] sm:$0xf]
        %v1015 = vld [vmem:[%s504 + $0x38] sm:$0xf]
        %v1016 = vld [vmem:[%s504 + $0x3c] sm:$0xf]
        %v1033 = vunpack.c.l.b16 %v1001
        %v1034 = vunpack.c.l.b16 %v1002
        %v1035 = vunpack.c.l.b16 %v1003
        %v1036 = vunpack.c.l.b16 %v1004
        %v1037 = vunpack.c.l.b16 %v1005
        %v1038 = vunpack.c.l.b16 %v1006
        %v1039 = vunpack.c.l.b16 %v1007
        %v1040 = vunpack.c.l.b16 %v1008
        %v1041 = vunpack.c.l.b16 %v1009
        %v1042 = vunpack.c.l.b16 %v1010
        %v1043 = vunpack.c.l.b16 %v1011
        %v1044 = vunpack.c.l.b16 %v1012
        %v1045 = vunpack.c.l.b16 %v1013
        %v1046 = vunpack.c.l.b16 %v1014
        %v1047 = vunpack.c.l.b16 %v1015
        %v1048 = vunpack.c.l.b16 %v1016
        %v1049 = vpack.c.b16 %v1034, %v1033
        %v1050 = vpack.c.b16 %v1036, %v1035
        %v1051 = vpack.c.b16 %v1038, %v1037
        %v1052 = vpack.c.b16 %v1040, %v1039
        %v1053 = vpack.c.b16 %v1042, %v1041
        %v1054 = vpack.c.b16 %v1044, %v1043
        %v1055 = vpack.c.b16 %v1046, %v1045
        %v1056 = vpack.c.b16 %v1048, %v1047
        %1065 = vmatpush.bf16.msra.mxu0 %v1056
        %1066 = vmatpush.bf16.msra.mxu0 %v1055
        %1067 = vmatpush.bf16.msra.mxu0 %v1054
        %1068 = vmatpush.bf16.msra.mxu0 %v1053
        %1069 = vmatpush.bf16.msra.mxu0 %v1052
        %1070 = vmatpush.bf16.msra.mxu0 %v1051
        %1071 = vmatpush.bf16.msra.mxu0 %v1050
        %1072 = vmatpush.bf16.msra.mxu0 %v1049
        %1073 = vmatmul.bf16.gmra.mxu0 %v1000
        %v1074 = vpop.f32.mrf.mxu0
        %v1075 = vadd.f32 0.0, %v1074
        %v1076 = vpop.f32.mrf.mxu0
        %1077 = vdwg.mxu0
        %v1078 = vadd.f32 %v999, %v1075
        %1079 = vst.msk [vmem:[#allocation5] sm:$0xff] %vm981, %v1078
        // Predicated region
        $region81: #{tpu_custom_call.1} parent=63 // pred_check
          %p1080 = pneg %p509
        $region82: #{tpu_custom_call.1} parent=63 // pred_check_branch
          %1082 = sbr.rel (%p1080) target = $region84
        $region83: #{tpu_custom_call.1} parent=63 // pred_region
          %v1083 = vld [vmem:[#allocation4] sm:$0xff]
          %v1084 = vld [vmem:[#allocation5] sm:$0xff]
          %v1085 = vld [vmem:[#allocation9] sm:$0x1]
          %v1087 = vperm.slane %v1085, 0
          %v1089 = vadd.f32 %v1084, %v1087
          %v1090 = vadd.f32 %v1089, %v1083
          %v1091 = vsel %vm981, %v1090, 0.0
          %1092 = vadd.xlane.f32.xlu0 %v1091
          %v1093 = vpop.xlane.xlu0 %1092
          %v1094 = vrcp.pop 32.0
          %v1095 = vmul.f32 32.0, %v1094
          %v1096 = vsub.f32 1.0, %v1095
          %v1097 = vmul.f32 %v1094, %v1096
          %v1098 = vadd.f32 %v1094, %v1097
          %vm1099 = vweird.f32 %v1094
          %v1100 = vsel %vm1099, %v1094, %v1098
          %v1101 = vmul.f32 %v1093, %v1100
          %v1102 = vsub.f32 %v1090, %v1101
          %v1103 = vmul.f32 %v1102, %v1102
          %v1104 = vsel %vm981, %v1103, 0.0
          %1105 = vadd.xlane.f32.xlu0 %v1104
          %v1106 = vpop.xlane.xlu0 %1105
          %v1107 = vmul.f32 %v1106, %v1100
          %v1108 = vadd.f32 %v1107, 1e-05
          %v1109 = vrsqrt.pop %v1108
          %v1110 = vmul.f32 %v1109, %v1108
          %v1111 = vmul.f32 %v1110, %v1109
          %v1112 = vmul.f32 0.5, %v1111
          %v1113 = vsub.f32 1.5, %v1112
          %v1114 = vmul.f32 %v1109, %v1113
          %vm1115 = vweird.f32 %v1108
          %vm1116 = vweird.f32 %v1109
          %vm1117 = vmor %vm1115, %vm1116
          %v1118 = vsel %vm1117, %v1109, %v1114
          %v1119 = vmul.f32 %v1102, %v1118
          %v1120 = vperm.slane %v507, 2
          %v1121 = vmul.f32 %v1119, %v1120
          %v1122 = vperm.slane %v507, 3
          %v1123 = vadd.f32 %v1121, %v1122
          %v1124 = vpack.c.bf16 %v1123, %v1123
          %vm1125 = vcmask 257024
          %1126 = vst.msk [vmem:[%s484] sm:$0xf] %vm1125, %v1124
        $region84: #{tpu_custom_call.1} parent=63 // pred_fallthru
          _
        %s1127 = sand.u32 %s314, 1
        %s1128 = scalar_lea.sflag [#allocation8], %s1127
        %s1129 = sand.u32 %s314, 1
        %s1130 = smul.addr %s1129, 4
        %s1131 = scalar_lea.vmem [#allocation11], %s1130
        // Predicated region
        $region85: #{tpu_custom_call.1} parent=63 // pred_check
          %p1132 = pneg %p324
        $region86: #{tpu_custom_call.1} parent=63 // pred_check_branch
          %1134 = sbr.rel (%p1132) target = $region88
        $region87: #{tpu_custom_call.1} parent=63 // pred_region
          %1136 = vsyncadd %s1128, 0
          %s1137 = sadd.s32 %s33, %s32
          %s1138 = smul.addr %s1137, 4
          %s1139 = scalar_lea.hbm %s11, %s1138
          %s1141 = sshll.u32 %s1131, 4
          %s1142 = int_to_ptr.vmem [resolvable:$true] %s1141
          %s1143 = sshll.u32 %s1139, 4
          %s1144 = int_to_ptr.hbm [resolvable:$true] %s1143
          %1146 = dma.vmem_to_hbm [thread:$0]  %s1142, 64, %s1144, %s1128
        $region88: #{tpu_custom_call.1} parent=63 // pred_fallthru
          _
      $region64: #{tpu_custom_call.1} parent=5 // pred_fallthru
        _
      %p1147 = scmp.le.s32.totalorder 2, %s22
      // Predicated region
      $region89: #{tpu_custom_call.1} parent=5 // pred_check
        %p1148 = pneg %p1147
      $region90: #{tpu_custom_call.1} parent=5 // pred_check_branch
        %1150 = sbr.rel (%p1148) target = $region92
      $region91: #{tpu_custom_call.1} parent=5 // pred_region
        %s1151 = ssub.s32 %s22, 2
        // Predicated region
        $region93: #{tpu_custom_call.1} parent=91 // pred_check
          %p1152 = pneg %p330
        $region94: #{tpu_custom_call.1} parent=91 // pred_check_branch
          %1154 = sbr.rel (%p1152) target = $region96
        $region95: #{tpu_custom_call.1} parent=91 // pred_region
          %s1155 = sand.u32 %s315, 1
          %s1156 = scalar_lea.sflag [#allocation8], %s1155
          %s1157 = sand.u32 %s315, 1
          %s1158 = smul.addr %s1157, 4
          %s1159 = scalar_lea.vmem [#allocation11], %s1158
          %1161 = dma.done %s1156, 64
        $region96: #{tpu_custom_call.1} parent=91 // pred_fallthru
          _
      $region92: #{tpu_custom_call.1} parent=5 // pred_fallthru
        _
    $region6: #{tpu_custom_call.1} parent=1 // loop_footer
      %s26 = sadd.s32 1, %s22
    $region7: #{tpu_custom_call.1} parent=1 // loop_footer_branch
      %21 = sbr.rel target = $region3
    $region8: #{tpu_custom_call.1} parent=1 // loop_exit
      _
    %1162 = vsyncpa [#allocation7], 1
    %s1163 = scalar_lea.sflag [#allocation7], 1
    %1164 = vsyncpa %s1163, 1
    %1165 = vsyncpa [#allocation10], 1
    %1166 = vsyncpa [#allocation8], 1
    %s1167 = scalar_lea.sflag [#allocation8], 1
    %1168 = vsyncpa %s1167, 1

</llo_original>
